<compile_context>
chip_gen: v6e
topology: v6e:2x2x1
jax: 0.10.0
libtpu: 0.0.40
codegen_flags: <defaults>
</compile_context>

<pallas_src>
import jax
import jax.numpy as jnp
from jax import lax
from jax.experimental import pallas as pl
from jax.experimental.pallas import tpu as pltpu

IMG_SIZE = 28
IMG_FEATS = IMG_SIZE * IMG_SIZE          # 784
IN_FEATS = IMG_FEATS + 10                # 794 (torch concat width)
H1, H2, OUT = 512, 256, 1
NUM_CLASSES, EMB_DIM = 10, 10
NUM_CLASSES_PAD = 16                     # sublane-friendly padded class count
NEG_SLOPE = 0.2
MAX_TB = 512                             # batch tile upper bound


def _leaky_relu(x, negative_slope=NEG_SLOPE):
    # max(x, a*x) == leaky_relu(x) for 0 < a < 1: one vmul + one vmax.
    return jnp.maximum(x, negative_slope * x)


def _round_up(n, m):
    return ((n + m - 1) // m) * m


def discriminator_kernel(x_ref, lbl_ref, emb_ref, w1_ref, w2_ref, b2_ref,
                         w3_ref, b3_ref, o_ref):
    tb = x_ref.shape[0]

    # Layer 1, image part: (TB, 784) bf16 @ (784, 512) bf16 -> f32 on the MXU.
    h1 = jnp.dot(x_ref[...], w1_ref[...], preferred_element_type=jnp.float32)

    # Layer 1, label part: one-hot select of the folded (emb @ W1_lbl + b1)
    # table via a tiny K=16 MXU matmul (one-hot rows are exactly 0/1).
    onehot = (lbl_ref[...] == lax.broadcasted_iota(
        jnp.int32, (tb, NUM_CLASSES_PAD), 1)).astype(jnp.float32)
    h1 = h1 + jnp.dot(onehot, emb_ref[...], preferred_element_type=jnp.float32)
    h1 = _leaky_relu(h1)

    # Layer 2: (TB, 512) @ (512, 256), bf16 in / f32 accumulate.
    h2 = jnp.dot(h1.astype(jnp.bfloat16), w2_ref[...],
                 preferred_element_type=jnp.float32)
    h2 = _leaky_relu(h2 + b2_ref[...])

    # Layer 3 (256 -> 1): VPU multiply + cross-lane (XLU) reduction instead of
    # a 1-column MXU matmul.
    logits = jnp.sum(h2 * w3_ref[...], axis=-1, keepdims=True) + b3_ref[...]
    o_ref[...] = jax.nn.sigmoid(logits)


def prepare_kernel_params(params):
    """Torch-layout f32 params -> kernel-friendly layout (done once)."""
    w1 = params["w1"]                                        # (794, 512)
    # Fold label embedding, the label slice of W1, and b1 into a small table.
    emb_table = params["label_emb"] @ w1[IMG_FEATS:, :] + params["b1"]
    emb_table = jnp.pad(
        emb_table, ((0, NUM_CLASSES_PAD - NUM_CLASSES), (0, 0)))
    return dict(
        w1_img=w1[:IMG_FEATS, :].astype(jnp.bfloat16),       # (784, 512)
        emb_table=emb_table.astype(jnp.float32),             # (16, 512) f32
        w2=params["w2"].astype(jnp.bfloat16),                 # (512, 256)
        b2=params["b2"].astype(jnp.float32),                  # (1, 256)
        w3_row=params["w3"].T.astype(jnp.float32),            # (1, 256)
        b3=params["b3"].astype(jnp.float32),                  # (1, 1)
    )


@jax.jit
def discriminator_forward(img, labels, kp):
    """img: (B,1,28,28) bf16 (preferred) or f32, labels: (B,) int -> (B,1) f32."""
    B = img.shape[0]
    img_flat = img.reshape(B, IMG_FEATS)
    if img_flat.dtype != jnp.bfloat16:
        # Prefer bf16 from the upstream pipeline; this fallback cast adds an
        # extra HBM read+write pass for f32 callers.
        img_flat = img_flat.astype(jnp.bfloat16)
    labels2d = labels.reshape(B, 1).astype(jnp.int32)

    # Largest 8-aligned tile that still yields >= 2 grid steps for B >= 16
    # (keeps both v7x TensorCores busy), capped at MAX_TB.
    tb = min(MAX_TB, max(8, _round_up(pl.cdiv(B, 2), 8)))
    grid = (pl.cdiv(B, tb),)          # ragged last tile handled by Pallas

    batch_spec = lambda n: pl.BlockSpec((tb, n), lambda i: (i, 0))
    const_spec = lambda shape: pl.BlockSpec(shape, lambda i: (0, 0))

    n_bytes = lambda a: a.size * a.dtype.itemsize
    cost = pl.CostEstimate(
        flops=2 * B * (IMG_FEATS * H1 + NUM_CLASSES_PAD * H1 + H1 * H2 + H2),
        transcendentals=B,
        bytes_accessed=(n_bytes(img_flat) + n_bytes(labels2d)
                        + sum(n_bytes(v) for v in kp.values())
                        + B * OUT * 4),
    )

    out = pl.pallas_call(
        discriminator_kernel,
        out_shape=jax.ShapeDtypeStruct((B, OUT), jnp.float32),
        grid=grid,
        in_specs=[
            batch_spec(IMG_FEATS),               # x          (TB, 784) bf16
            batch_spec(1),                       # labels     (TB, 1)   int32
            const_spec((NUM_CLASSES_PAD, H1)),   # emb_table  (16, 512) f32
            const_spec((IMG_FEATS, H1)),         # w1_img     (784, 512) bf16
            const_spec((H1, H2)),                # w2         (512, 256) bf16
            const_spec((1, H2)),                 # b2         (1, 256) f32
            const_spec((1, H2)),                 # w3_row     (1, 256) f32
            const_spec((1, OUT)),                # b3         (1, 1) f32
        ],
        out_specs=pl.BlockSpec((tb, OUT), lambda i: (i, 0)),
        compiler_params=pltpu.CompilerParams(
            dimension_semantics=("parallel",)),
        cost_estimate=cost,
    )(img_flat, labels2d, kp["emb_table"], kp["w1_img"], kp["w2"], kp["b2"],
      kp["w3_row"], kp["b3"])
    return out


def init_params(key):
    # Deterministic synthetic init (roughly PyTorch-like uniform scales).
    def lin(k, fan_in, fan_out):
        bound = 1.0 / jnp.sqrt(fan_in)
        kw, kb = jax.random.split(k)
        w = jax.random.uniform(kw, (fan_in, fan_out), jnp.float32, -bound, bound)
        b = jax.random.uniform(kb, (1, fan_out), jnp.float32, -bound, bound)
        return w, b

    ks = jax.random.split(key, 4)
    w1, b1 = lin(ks[0], IN_FEATS, H1)
    w2, b2 = lin(ks[1], H1, H2)
    w3, b3 = lin(ks[2], H2, OUT)
    label_emb = jax.random.normal(ks[3], (NUM_CLASSES, EMB_DIM), jnp.float32)
    return dict(w1=w1, b1=b1, w2=w2, b2=b2, w3=w3, b3=b3, label_emb=label_emb)


def reference_forward_f32(img, labels, params):
    """Pure-f32 reference matching the PyTorch module semantics exactly."""
    B = img.shape[0]
    emb = params["label_emb"][labels]
    x = jnp.concatenate([img.reshape(B, -1).astype(jnp.float32), emb], axis=1)
    h1 = _leaky_relu(x @ params["w1"] + params["b1"])
    h2 = _leaky_relu(h1 @ params["w2"] + params["b2"])
    return jax.nn.sigmoid(h2 @ params["w3"] + params["b3"])


def reference_kernel_math(img, labels, kp):
    """Pure-JAX emulation of the kernel's mixed bf16/f32 math path."""
    B = img.shape[0]
    x = img.reshape(B, IMG_FEATS).astype(jnp.bfloat16)
    h1 = jnp.dot(x, kp["w1_img"], preferred_element_type=jnp.float32)
    h1 = _leaky_relu(h1 + kp["emb_table"][labels])
    h2 = jnp.dot(h1.astype(jnp.bfloat16), kp["w2"],
                 preferred_element_type=jnp.float32)
    h2 = _leaky_relu(h2 + kp["b2"])
    logits = jnp.sum(h2 * kp["w3_row"], axis=-1, keepdims=True) + kp["b3"]
    return jax.nn.sigmoid(logits)


if __name__ == "__main__":
    key = jax.random.PRNGKey(0)
    k_img, k_lbl, k_par = jax.random.split(key, 3)

    B = 2
    img = jax.random.normal(k_img, (B, 1, IMG_SIZE, IMG_SIZE), jnp.float32)
    labels = jax.random.randint(k_lbl, (B,), 0, NUM_CLASSES, jnp.int32)

    params = init_params(k_par)
    kparams = prepare_kernel_params(params)

    # Upstream pipeline hands the discriminator bf16 activations (e.g. a bf16
    # generator output); quantize once here so the kernel's fast path is used.
    img_bf16 = img.astype(jnp.bfloat16)

    prob = discriminator_forward(img_bf16, labels, kparams)
    prob = jax.block_until_ready(prob)
    assert prob.shape == (B, OUT)

    # Tight check vs. an exact emulation of the kernel's bf16/f32 math.
    ref_exact = reference_kernel_math(img_bf16, labels, kparams)
    assert jnp.allclose(prob, ref_exact, atol=2e-3, rtol=2e-3), (
        float(jnp.max(jnp.abs(prob - ref_exact))))

    # Loose check vs. the pure-f32 PyTorch-equivalent forward (bf16 weights).
    ref_f32 = reference_forward_f32(img_bf16.astype(jnp.float32), labels, params)
    assert jnp.allclose(prob, ref_f32, atol=2e-2, rtol=2e-2), (
        float(jnp.max(jnp.abs(prob - ref_f32))))

    print("KERNEL_OK")
</pallas_src>

<mosaic_0001>
module attributes {stable_mosaic.version = 11 : i64} {
  func.func @discriminator_kernel(%arg0: i32, %arg1: memref<8x784xbf16, #tpu.memory_space<vmem>>, %arg2: memref<8x1xi32, #tpu.memory_space<vmem>>, %arg3: memref<16x512xf32, #tpu.memory_space<vmem>>, %arg4: memref<784x512xbf16, #tpu.memory_space<vmem>>, %arg5: memref<512x256xbf16, #tpu.memory_space<vmem>>, %arg6: memref<1x256xf32, #tpu.memory_space<vmem>>, %arg7: memref<1x256xf32, #tpu.memory_space<vmem>>, %arg8: memref<1x1xf32, #tpu.memory_space<vmem>>, %arg9: memref<8x1xf32, #tpu.memory_space<vmem>>) attributes {dimension_semantics = [#tpu.dimension_semantics<parallel>], iteration_bounds = array<i64: 1>, scalar_prefetch = 0 : i64, scratch_operands = 0 : i64, tpu.core_type = #tpu.core_type<tc>, window_params = [{transform_indices = @transform_0, window_bounds = array<i64: 8, 784>}, {transform_indices = @transform_1, window_bounds = array<i64: 8, 1>}, {pipeline_mode = #tpu.pipeline_mode<synchronous>, transform_indices = @transform_2, window_bounds = array<i64: 16, 512>}, {pipeline_mode = #tpu.pipeline_mode<synchronous>, transform_indices = @transform_3, window_bounds = array<i64: 784, 512>}, {pipeline_mode = #tpu.pipeline_mode<synchronous>, transform_indices = @transform_4, window_bounds = array<i64: 512, 256>}, {pipeline_mode = #tpu.pipeline_mode<synchronous>, transform_indices = @transform_5, window_bounds = array<i64: 1, 256>}, {pipeline_mode = #tpu.pipeline_mode<synchronous>, transform_indices = @transform_6, window_bounds = array<i64: 1, 256>}, {pipeline_mode = #tpu.pipeline_mode<synchronous>, transform_indices = @transform_7, window_bounds = array<i64: 1, 1>}, {transform_indices = @transform_8, window_bounds = array<i64: 8, 1>}]} {
    %c0 = arith.constant 0 : index
    %c0_0 = arith.constant 0 : index
    %0 = vector.load %arg1[%c0, %c0_0] : memref<8x784xbf16, #tpu.memory_space<vmem>>, vector<8x784xbf16>
    %c0_1 = arith.constant 0 : index
    %c0_2 = arith.constant 0 : index
    %1 = vector.load %arg4[%c0_1, %c0_2] : memref<784x512xbf16, #tpu.memory_space<vmem>>, vector<784x512xbf16>
    %cst = arith.constant dense<0.000000e+00> : vector<8x512xf32>
    %2 = tpu.matmul %0, %1, %cst {dimension_numbers = #tpu.dot_dimension_numbers<[1], [0], [0], [1], [0, 0, 1, 1], [], []>} : vector<8x784xbf16>, vector<784x512xbf16>, vector<8x512xf32> -> vector<8x512xf32>
    %c0_3 = arith.constant 0 : index
    %c0_4 = arith.constant 0 : index
    %3 = vector.load %arg2[%c0_3, %c0_4] : memref<8x1xi32, #tpu.memory_space<vmem>>, vector<8x1xi32>
    %4 = tpu.iota {dimensions = array<i32: 1>} : vector<8x16xi32>
    %5 = vector.broadcast %3 : vector<8x1xi32> to vector<8x16xi32>
    %6 = arith.cmpi eq, %5, %4 : vector<8x16xi32>
    %7 = arith.extui %6 : vector<8x16xi1> to vector<8x16xi32>
    %8 = arith.sitofp %7 : vector<8x16xi32> to vector<8x16xf32>
    %c0_5 = arith.constant 0 : index
    %c0_6 = arith.constant 0 : index
    %9 = vector.load %arg3[%c0_5, %c0_6] : memref<16x512xf32, #tpu.memory_space<vmem>>, vector<16x512xf32>
    %cst_7 = arith.constant dense<0.000000e+00> : vector<8x512xf32>
    %10 = tpu.matmul %8, %9, %cst_7 {dimension_numbers = #tpu.dot_dimension_numbers<[1], [0], [0], [1], [0, 0, 1, 1], [], []>} : vector<8x16xf32>, vector<16x512xf32>, vector<8x512xf32> -> vector<8x512xf32>
    %11 = arith.addf %2, %10 : vector<8x512xf32>
    %cst_8 = arith.constant 2.000000e-01 : f32
    %12 = vector.broadcast %cst_8 : f32 to vector<8x512xf32>
    %13 = arith.mulf %12, %11 : vector<8x512xf32>
    %14 = arith.maximumf %11, %13 : vector<8x512xf32>
    %15 = arith.truncf %14 : vector<8x512xf32> to vector<8x512xbf16>
    %c0_9 = arith.constant 0 : index
    %c0_10 = arith.constant 0 : index
    %16 = vector.load %arg5[%c0_9, %c0_10] : memref<512x256xbf16, #tpu.memory_space<vmem>>, vector<512x256xbf16>
    %cst_11 = arith.constant dense<0.000000e+00> : vector<8x256xf32>
    %17 = tpu.matmul %15, %16, %cst_11 {dimension_numbers = #tpu.dot_dimension_numbers<[1], [0], [0], [1], [0, 0, 1, 1], [], []>} : vector<8x512xbf16>, vector<512x256xbf16>, vector<8x256xf32> -> vector<8x256xf32>
    %c0_12 = arith.constant 0 : index
    %c0_13 = arith.constant 0 : index
    %18 = vector.load %arg6[%c0_12, %c0_13] : memref<1x256xf32, #tpu.memory_space<vmem>>, vector<1x256xf32>
    %19 = vector.broadcast %18 : vector<1x256xf32> to vector<8x256xf32>
    %20 = arith.addf %17, %19 : vector<8x256xf32>
    %cst_14 = arith.constant 2.000000e-01 : f32
    %21 = vector.broadcast %cst_14 : f32 to vector<8x256xf32>
    %22 = arith.mulf %21, %20 : vector<8x256xf32>
    %23 = arith.maximumf %20, %22 : vector<8x256xf32>
    %c0_15 = arith.constant 0 : index
    %c0_16 = arith.constant 0 : index
    %24 = vector.load %arg7[%c0_15, %c0_16] : memref<1x256xf32, #tpu.memory_space<vmem>>, vector<1x256xf32>
    %25 = vector.broadcast %24 : vector<1x256xf32> to vector<8x256xf32>
    %26 = arith.mulf %23, %25 : vector<8x256xf32>
    %cst_17 = arith.constant dense<0.000000e+00> : vector<8xf32>
    %27 = vector.multi_reduction <add>, %26, %cst_17 [1] : vector<8x256xf32> to vector<8xf32>
    %28 = vector.shape_cast %27 : vector<8xf32> to vector<8x1xf32>
    %c0_18 = arith.constant 0 : index
    %c0_19 = arith.constant 0 : index
    %29 = vector.load %arg8[%c0_18, %c0_19] : memref<1x1xf32, #tpu.memory_space<vmem>>, vector<1x1xf32>
    %30 = vector.broadcast %29 : vector<1x1xf32> to vector<8x1xf32>
    %31 = arith.addf %28, %30 : vector<8x1xf32>
    %32 = arith.negf %31 : vector<8x1xf32>
    %33 = math.exp %32 : vector<8x1xf32>
    %cst_20 = arith.constant 1.000000e+00 : f32
    %34 = vector.broadcast %cst_20 : f32 to vector<8x1xf32>
    %35 = arith.addf %34, %33 : vector<8x1xf32>
    %36 = arith.divf %34, %35 : vector<8x1xf32>
    %c0_21 = arith.constant 0 : index
    %c0_22 = arith.constant 0 : index
    %37 = vector.load %arg9[%c0_21, %c0_22] : memref<8x1xf32, #tpu.memory_space<vmem>>, vector<8x1xf32>
    tpu.vector_store %arg9[%c0_21, %c0_22], %36 {strides = array<i32>} : memref<8x1xf32, #tpu.memory_space<vmem>>, vector<8x1xf32>,
    return
  }
  func.func @transform_0(%arg0: i32) -> (i32, i32) {
    %c0_i32 = arith.constant 0 : i32
    %c0_i32_0 = arith.constant 0 : i32
    return %arg0, %c0_i32 : i32, i32
  }
  func.func @transform_1(%arg0: i32) -> (i32, i32) {
    %c0_i32 = arith.constant 0 : i32
    %c0_i32_0 = arith.constant 0 : i32
    return %arg0, %c0_i32 : i32, i32
  }
  func.func @transform_2(%arg0: i32) -> (i32, i32) {
    %c0_i32 = arith.constant 0 : i32
    %c0_i32_0 = arith.constant 0 : i32
    %c0_i32_1 = arith.constant 0 : i32
    return %c0_i32, %c0_i32_0 : i32, i32
  }
  func.func @transform_3(%arg0: i32) -> (i32, i32) {
    %c0_i32 = arith.constant 0 : i32
    %c0_i32_0 = arith.constant 0 : i32
    %c0_i32_1 = arith.constant 0 : i32
    return %c0_i32, %c0_i32_0 : i32, i32
  }
  func.func @transform_4(%arg0: i32) -> (i32, i32) {
    %c0_i32 = arith.constant 0 : i32
    %c0_i32_0 = arith.constant 0 : i32
    %c0_i32_1 = arith.constant 0 : i32
    return %c0_i32, %c0_i32_0 : i32, i32
  }
  func.func @transform_5(%arg0: i32) -> (i32, i32) {
    %c0_i32 = arith.constant 0 : i32
    %c0_i32_0 = arith.constant 0 : i32
    %c0_i32_1 = arith.constant 0 : i32
    return %c0_i32, %c0_i32_0 : i32, i32
  }
  func.func @transform_6(%arg0: i32) -> (i32, i32) {
    %c0_i32 = arith.constant 0 : i32
    %c0_i32_0 = arith.constant 0 : i32
    %c0_i32_1 = arith.constant 0 : i32
    return %c0_i32, %c0_i32_0 : i32, i32
  }
  func.func @transform_7(%arg0: i32) -> (i32, i32) {
    %c0_i32 = arith.constant 0 : i32
    %c0_i32_0 = arith.constant 0 : i32
    %c0_i32_1 = arith.constant 0 : i32
    return %c0_i32, %c0_i32_0 : i32, i32
  }
  func.func @transform_8(%arg0: i32) -> (i32, i32) {
    %c0_i32 = arith.constant 0 : i32
    %c0_i32_0 = arith.constant 0 : i32
    return %arg0, %c0_i32 : i32, i32
  }
}

</mosaic_0001>

<llo_original>
// kernel: discriminator_forward.1
$region0: #{discriminator_forward.1}
  #allocation0 [shape = 'u32[]', space=smem, size = 0x4, offset = 0x4, fixed_abs, tag = 'smem constant byte address 0x4 - core index']
  #allocation1 [shape = 'u32[144,128]{1,0:T(1,128)}', space=vmem, size = 0x12000, scoped, tag = 'internal scratch']
  #allocation2 [shape = 'f32[1,1]{1,0:T(1,128)S(1)}', space=vmem, size = 0x200, scoped, tag = 'scoped memory for discriminator_forward.1']
  %s0 = inlined_call_operand.vmem [shape: bf16[2,784], index: 0, kind: input, shape index: {}]
  %s1 = inlined_call_operand.vmem [shape: s32[2,1], index: 1, kind: input, shape index: {}]
  %s2 = inlined_call_operand.vmem [shape: f32[16,512], index: 2, kind: input, shape index: {}]
  %s3 = inlined_call_operand.hbm [shape: bf16[784,512], index: 3, kind: input, shape index: {}]
  %s4 = inlined_call_operand.hbm [shape: bf16[512,256], index: 4, kind: input, shape index: {}]
  %s5 = inlined_call_operand.vmem [shape: f32[1,256], index: 5, kind: input, shape index: {}]
  %s6 = inlined_call_operand.vmem [shape: f32[1,256], index: 6, kind: input, shape index: {}]
  %s7 = inlined_call_operand.<no memory space> [shape: f32[1,1], index: 7, kind: input, shape index: {}]
  %s8 = inlined_call_operand.vmem [shape: f32[2,1], index: 8, kind: output, shape index: {}]
  %s9 = sld [smem:[#allocation0]]
  $region80: #{discriminator_forward.1} parent=0
    _
  %s11 = ssub.s32 1, %s9
  %s12 = scalar_select 0, %s11, %s9
  %v13 = vstv %s7
  %14 = vst [vmem:[#allocation2] sm:$0x1] %v13
  $region1: #{discriminator_forward.1} parent=0
    #allocation3 [shape = 'u8[802816]{0}', space=vmem, size = 0xc4000, scoped, tag = 'input window, operand 3, single buffered']
    #allocation4 [shape = 's32[1]{0}', space=sflag, size = 0x4, scoped, tag = 'scoped memory for discriminator_forward.1']
    #allocation5 [shape = 'u8[262144]{0}', space=vmem, size = 0x40000, scoped, tag = 'input window, operand 4, single buffered']
    #allocation6 [shape = 's32[1]{0}', space=sflag, size = 0x4, scoped, tag = 'scoped memory for discriminator_forward.1']
    #allocation7 [shape = 'u8[4096]{0}', space=vmem, size = 0x1000, scoped, tag = 'output window, operand 0, single buffered']
    %15 = vsyncpa [#allocation4], 0
    %16 = vsyncpa [#allocation6], 0
    // Predicated region
    $region2: #{discriminator_forward.1} parent=1 // pred_check
      _
    $region3: #{discriminator_forward.1} parent=1 // pred_check_branch
      %18 = sbr.rel (0) target = $region5
    $region4: #{discriminator_forward.1} parent=1 // pred_region
      _
    $region5: #{discriminator_forward.1} parent=1 // pred_fallthru
      _
    // Predicated region
    $region6: #{discriminator_forward.1} parent=1 // pred_check
      _
    $region7: #{discriminator_forward.1} parent=1 // pred_check_branch
      %20 = sbr.rel (0) target = $region9
    $region8: #{discriminator_forward.1} parent=1 // pred_region
      _
    $region9: #{discriminator_forward.1} parent=1 // pred_fallthru
      _
    // Predicated region
    $region10: #{discriminator_forward.1} parent=1 // pred_check
      _
    $region11: #{discriminator_forward.1} parent=1 // pred_check_branch
      %22 = sbr.rel (0) target = $region13
    $region12: #{discriminator_forward.1} parent=1 // pred_region
      _
    $region13: #{discriminator_forward.1} parent=1 // pred_fallthru
      _
    // Predicated region
    $region14: #{discriminator_forward.1} parent=1 // pred_check
      _
    $region15: #{discriminator_forward.1} parent=1 // pred_check_branch
      %24 = sbr.rel (0) target = $region17
    $region16: #{discriminator_forward.1} parent=1 // pred_region
      %s26 = ssub.s32 25088, 25088
      %27 = vsyncadd [#allocation4], %s26
      %s28 = sshll.u32 [#allocation3], 4
      %s29 = int_to_ptr.vmem [resolvable:$true] %s28
      %34 = dma.hbm_to_vmem [thread:$0]  %s3, 25088, %s29, [#allocation4], 256, 256, 16
    $region17: #{discriminator_forward.1} parent=1 // pred_fallthru
      _
    // Predicated region
    $region18: #{discriminator_forward.1} parent=1 // pred_check
      _
    $region19: #{discriminator_forward.1} parent=1 // pred_check_branch
      %36 = sbr.rel (0) target = $region21
    $region20: #{discriminator_forward.1} parent=1 // pred_region
      %s38 = ssub.s32 8192, 8192
      %39 = vsyncadd [#allocation6], %s38
      %s40 = sshll.u32 [#allocation5], 4
      %s41 = int_to_ptr.vmem [resolvable:$true] %s40
      %46 = dma.hbm_to_vmem [thread:$0]  %s4, 8192, %s41, [#allocation6], 128, 128, 8
    $region21: #{discriminator_forward.1} parent=1 // pred_fallthru
      _
    // Predicated region
    $region22: #{discriminator_forward.1} parent=1 // pred_check
      _
    $region23: #{discriminator_forward.1} parent=1 // pred_check_branch
      %48 = sbr.rel (0) target = $region25
    $region24: #{discriminator_forward.1} parent=1 // pred_region
      _
    $region25: #{discriminator_forward.1} parent=1 // pred_fallthru
      _
    // Predicated region
    $region26: #{discriminator_forward.1} parent=1 // pred_check
      _
    $region27: #{discriminator_forward.1} parent=1 // pred_check_branch
      %50 = sbr.rel (0) target = $region29
    $region28: #{discriminator_forward.1} parent=1 // pred_region
      _
    $region29: #{discriminator_forward.1} parent=1 // pred_fallthru
      _
    // Predicated region
    $region30: #{discriminator_forward.1} parent=1 // pred_check
      _
    $region31: #{discriminator_forward.1} parent=1 // pred_check_branch
      %52 = sbr.rel (0) target = $region33
    $region32: #{discriminator_forward.1} parent=1 // pred_region
      _
    $region33: #{discriminator_forward.1} parent=1 // pred_fallthru
      _
    // Predicated region
    $region34: #{discriminator_forward.1} parent=1 // pred_check
      _
    $region35: #{discriminator_forward.1} parent=1 // pred_check_branch
      %54 = sbr.rel (0) target = $region37
    $region36: #{discriminator_forward.1} parent=1 // pred_region
      %55 = dma.done [#allocation4], 25088
    $region37: #{discriminator_forward.1} parent=1 // pred_fallthru
      _
    // Predicated region
    $region38: #{discriminator_forward.1} parent=1 // pred_check
      _
    $region39: #{discriminator_forward.1} parent=1 // pred_check_branch
      %57 = sbr.rel (0) target = $region41
    $region40: #{discriminator_forward.1} parent=1 // pred_region
      %58 = dma.done [#allocation6], 8192
    $region41: #{discriminator_forward.1} parent=1 // pred_fallthru
      _
    %v60 = vld [vmem:[%s0] sm:$0x7f]
    %v61 = vld [vmem:[%s0 + $0x7] sm:$0x7f]
    %v62 = vld [vmem:[%s0 + $0xe] sm:$0x7f]
    %v63 = vld [vmem:[%s0 + $0x15] sm:$0x7f]
    %v64 = vld [vmem:[#allocation3] sm:$0xff]
    %v65 = vld [vmem:[#allocation3 + $0x8] sm:$0xff]
    %v66 = vld [vmem:[#allocation3 + $0x10] sm:$0xff]
    %v67 = vld [vmem:[#allocation3 + $0x18] sm:$0xff]
    %v68 = vld [vmem:[#allocation3 + $0x20] sm:$0xff]
    %v69 = vld [vmem:[#allocation3 + $0x28] sm:$0xff]
    %v70 = vld [vmem:[#allocation3 + $0x30] sm:$0xff]
    %v71 = vld [vmem:[#allocation3 + $0x38] sm:$0xff]
    %v72 = vld [vmem:[#allocation3 + $0x40] sm:$0xff]
    %v73 = vld [vmem:[#allocation3 + $0x48] sm:$0xff]
    %v74 = vld [vmem:[#allocation3 + $0x50] sm:$0xff]
    %v75 = vld [vmem:[#allocation3 + $0x58] sm:$0xff]
    %v76 = vld [vmem:[#allocation3 + $0x60] sm:$0xff]
    %v77 = vld [vmem:[#allocation3 + $0x68] sm:$0xff]
    %v78 = vld [vmem:[#allocation3 + $0x70] sm:$0xff]
    %v79 = vld [vmem:[#allocation3 + $0x78] sm:$0xff]
    %v80 = vld [vmem:[#allocation3 + $0x80] sm:$0xff]
    %v81 = vld [vmem:[#allocation3 + $0x88] sm:$0xff]
    %v82 = vld [vmem:[#allocation3 + $0x90] sm:$0xff]
    %v83 = vld [vmem:[#allocation3 + $0x98] sm:$0xff]
    %v84 = vld [vmem:[#allocation3 + $0xa0] sm:$0xff]
    %v85 = vld [vmem:[#allocation3 + $0xa8] sm:$0xff]
    %v86 = vld [vmem:[#allocation3 + $0xb0] sm:$0xff]
    %v87 = vld [vmem:[#allocation3 + $0xb8] sm:$0xff]
    %v88 = vld [vmem:[#allocation3 + $0xc0] sm:$0xff]
    %v89 = vld [vmem:[#allocation3 + $0xc8] sm:$0xff]
    %v90 = vld [vmem:[#allocation3 + $0xd0] sm:$0xff]
    %v91 = vld [vmem:[#allocation3 + $0xd8] sm:$0xff]
    %v92 = vld [vmem:[#allocation3 + $0xe0] sm:$0xff]
    %v93 = vld [vmem:[#allocation3 + $0xe8] sm:$0xff]
    %v94 = vld [vmem:[#allocation3 + $0xf0] sm:$0xff]
    %v95 = vld [vmem:[#allocation3 + $0xf8] sm:$0xff]
    %v96 = vld [vmem:[#allocation3 + $0x100] sm:$0xff]
    %v97 = vld [vmem:[#allocation3 + $0x108] sm:$0xff]
    %v98 = vld [vmem:[#allocation3 + $0x110] sm:$0xff]
    %v99 = vld [vmem:[#allocation3 + $0x118] sm:$0xff]
    %v100 = vld [vmem:[#allocation3 + $0x120] sm:$0xff]
    %v101 = vld [vmem:[#allocation3 + $0x128] sm:$0xff]
    %v102 = vld [vmem:[#allocation3 + $0x130] sm:$0xff]
    %v103 = vld [vmem:[#allocation3 + $0x138] sm:$0xff]
    %v104 = vld [vmem:[#allocation3 + $0x140] sm:$0xff]
    %v105 = vld [vmem:[#allocation3 + $0x148] sm:$0xff]
    %v106 = vld [vmem:[#allocation3 + $0x150] sm:$0xff]
    %v107 = vld [vmem:[#allocation3 + $0x158] sm:$0xff]
    %v108 = vld [vmem:[#allocation3 + $0x160] sm:$0xff]
    %v109 = vld [vmem:[#allocation3 + $0x168] sm:$0xff]
    %v110 = vld [vmem:[#allocation3 + $0x170] sm:$0xff]
    %v111 = vld [vmem:[#allocation3 + $0x178] sm:$0xff]
    %v112 = vld [vmem:[#allocation3 + $0x180] sm:$0xff]
    %v113 = vld [vmem:[#allocation3 + $0x188] sm:$0xff]
    %v114 = vld [vmem:[#allocation3 + $0x190] sm:$0xff]
    %v115 = vld [vmem:[#allocation3 + $0x198] sm:$0xff]
    %v116 = vld [vmem:[#allocation3 + $0x1a0] sm:$0xff]
    %v117 = vld [vmem:[#allocation3 + $0x1a8] sm:$0xff]
    %v118 = vld [vmem:[#allocation3 + $0x1b0] sm:$0xff]
    %v119 = vld [vmem:[#allocation3 + $0x1b8] sm:$0xff]
    %v120 = vld [vmem:[#allocation3 + $0x1c0] sm:$0xff]
    %v121 = vld [vmem:[#allocation3 + $0x1c8] sm:$0xff]
    %v122 = vld [vmem:[#allocation3 + $0x1d0] sm:$0xff]
    %v123 = vld [vmem:[#allocation3 + $0x1d8] sm:$0xff]
    %v124 = vld [vmem:[#allocation3 + $0x1e0] sm:$0xff]
    %v125 = vld [vmem:[#allocation3 + $0x1e8] sm:$0xff]
    %v126 = vld [vmem:[#allocation3 + $0x1f0] sm:$0xff]
    %v127 = vld [vmem:[#allocation3 + $0x1f8] sm:$0xff]
    %v128 = vld [vmem:[#allocation3 + $0x200] sm:$0xff]
    %v129 = vld [vmem:[#allocation3 + $0x208] sm:$0xff]
    %v130 = vld [vmem:[#allocation3 + $0x210] sm:$0xff]
    %v131 = vld [vmem:[#allocation3 + $0x218] sm:$0xff]
    %v132 = vld [vmem:[#allocation3 + $0x220] sm:$0xff]
    %v133 = vld [vmem:[#allocation3 + $0x228] sm:$0xff]
    %v134 = vld [vmem:[#allocation3 + $0x230] sm:$0xff]
    %v135 = vld [vmem:[#allocation3 + $0x238] sm:$0xff]
    %v136 = vld [vmem:[#allocation3 + $0x240] sm:$0xff]
    %v137 = vld [vmem:[#allocation3 + $0x248] sm:$0xff]
    %v138 = vld [vmem:[#allocation3 + $0x250] sm:$0xff]
    %v139 = vld [vmem:[#allocation3 + $0x258] sm:$0xff]
    %v140 = vld [vmem:[#allocation3 + $0x260] sm:$0xff]
    %v141 = vld [vmem:[#allocation3 + $0x268] sm:$0xff]
    %v142 = vld [vmem:[#allocation3 + $0x270] sm:$0xff]
    %v143 = vld [vmem:[#allocation3 + $0x278] sm:$0xff]
    %v144 = vld [vmem:[#allocation3 + $0x280] sm:$0xff]
    %v145 = vld [vmem:[#allocation3 + $0x288] sm:$0xff]
    %v146 = vld [vmem:[#allocation3 + $0x290] sm:$0xff]
    %v147 = vld [vmem:[#allocation3 + $0x298] sm:$0xff]
    %v148 = vld [vmem:[#allocation3 + $0x2a0] sm:$0xff]
    %v149 = vld [vmem:[#allocation3 + $0x2a8] sm:$0xff]
    %v150 = vld [vmem:[#allocation3 + $0x2b0] sm:$0xff]
    %v151 = vld [vmem:[#allocation3 + $0x2b8] sm:$0xff]
    %v152 = vld [vmem:[#allocation3 + $0x2c0] sm:$0xff]
    %v153 = vld [vmem:[#allocation3 + $0x2c8] sm:$0xff]
    %v154 = vld [vmem:[#allocation3 + $0x2d0] sm:$0xff]
    %v155 = vld [vmem:[#allocation3 + $0x2d8] sm:$0xff]
    %v156 = vld [vmem:[#allocation3 + $0x2e0] sm:$0xff]
    %v157 = vld [vmem:[#allocation3 + $0x2e8] sm:$0xff]
    %v158 = vld [vmem:[#allocation3 + $0x2f0] sm:$0xff]
    %v159 = vld [vmem:[#allocation3 + $0x2f8] sm:$0xff]
    %v160 = vld [vmem:[#allocation3 + $0x300] sm:$0xff]
    %v161 = vld [vmem:[#allocation3 + $0x308] sm:$0xff]
    %v162 = vld [vmem:[#allocation3 + $0x310] sm:$0xff]
    %v163 = vld [vmem:[#allocation3 + $0x318] sm:$0xff]
    %v164 = vld [vmem:[#allocation3 + $0x320] sm:$0xff]
    %v165 = vld [vmem:[#allocation3 + $0x328] sm:$0xff]
    %v166 = vld [vmem:[#allocation3 + $0x330] sm:$0xff]
    %v167 = vld [vmem:[#allocation3 + $0x338] sm:$0xff]
    %v168 = vld [vmem:[#allocation3 + $0x340] sm:$0xff]
    %v169 = vld [vmem:[#allocation3 + $0x348] sm:$0xff]
    %v170 = vld [vmem:[#allocation3 + $0x350] sm:$0xff]
    %v171 = vld [vmem:[#allocation3 + $0x358] sm:$0xff]
    %v172 = vld [vmem:[#allocation3 + $0x360] sm:$0xff]
    %v173 = vld [vmem:[#allocation3 + $0x368] sm:$0xff]
    %v174 = vld [vmem:[#allocation3 + $0x370] sm:$0xff]
    %v175 = vld [vmem:[#allocation3 + $0x378] sm:$0xff]
    %v176 = vld [vmem:[#allocation3 + $0x380] sm:$0xff]
    %v177 = vld [vmem:[#allocation3 + $0x388] sm:$0xff]
    %v178 = vld [vmem:[#allocation3 + $0x390] sm:$0xff]
    %v179 = vld [vmem:[#allocation3 + $0x398] sm:$0xff]
    %v180 = vld [vmem:[#allocation3 + $0x3a0] sm:$0xff]
    %v181 = vld [vmem:[#allocation3 + $0x3a8] sm:$0xff]
    %v182 = vld [vmem:[#allocation3 + $0x3b0] sm:$0xff]
    %v183 = vld [vmem:[#allocation3 + $0x3b8] sm:$0xff]
    %v184 = vld [vmem:[#allocation3 + $0x3c0] sm:$0xff]
    %v185 = vld [vmem:[#allocation3 + $0x3c8] sm:$0xff]
    %v186 = vld [vmem:[#allocation3 + $0x3d0] sm:$0xff]
    %v187 = vld [vmem:[#allocation3 + $0x3d8] sm:$0xff]
    %v188 = vld [vmem:[#allocation3 + $0x3e0] sm:$0xff]
    %v189 = vld [vmem:[#allocation3 + $0x3e8] sm:$0xff]
    %v190 = vld [vmem:[#allocation3 + $0x3f0] sm:$0xff]
    %v191 = vld [vmem:[#allocation3 + $0x3f8] sm:$0xff]
    %v192 = vld [vmem:[#allocation3 + $0x400] sm:$0xff]
    %v193 = vld [vmem:[#allocation3 + $0x408] sm:$0xff]
    %v194 = vld [vmem:[#allocation3 + $0x410] sm:$0xff]
    %v195 = vld [vmem:[#allocation3 + $0x418] sm:$0xff]
    %v196 = vld [vmem:[#allocation3 + $0x420] sm:$0xff]
    %v197 = vld [vmem:[#allocation3 + $0x428] sm:$0xff]
    %v198 = vld [vmem:[#allocation3 + $0x430] sm:$0xff]
    %v199 = vld [vmem:[#allocation3 + $0x438] sm:$0xff]
    %v200 = vld [vmem:[#allocation3 + $0x440] sm:$0xff]
    %v201 = vld [vmem:[#allocation3 + $0x448] sm:$0xff]
    %v202 = vld [vmem:[#allocation3 + $0x450] sm:$0xff]
    %v203 = vld [vmem:[#allocation3 + $0x458] sm:$0xff]
    %v204 = vld [vmem:[#allocation3 + $0x460] sm:$0xff]
    %v205 = vld [vmem:[#allocation3 + $0x468] sm:$0xff]
    %v206 = vld [vmem:[#allocation3 + $0x470] sm:$0xff]
    %v207 = vld [vmem:[#allocation3 + $0x478] sm:$0xff]
    %v208 = vld [vmem:[#allocation3 + $0x480] sm:$0xff]
    %v209 = vld [vmem:[#allocation3 + $0x488] sm:$0xff]
    %v210 = vld [vmem:[#allocation3 + $0x490] sm:$0xff]
    %v211 = vld [vmem:[#allocation3 + $0x498] sm:$0xff]
    %v212 = vld [vmem:[#allocation3 + $0x4a0] sm:$0xff]
    %v213 = vld [vmem:[#allocation3 + $0x4a8] sm:$0xff]
    %v214 = vld [vmem:[#allocation3 + $0x4b0] sm:$0xff]
    %v215 = vld [vmem:[#allocation3 + $0x4b8] sm:$0xff]
    %v216 = vld [vmem:[#allocation3 + $0x4c0] sm:$0xff]
    %v217 = vld [vmem:[#allocation3 + $0x4c8] sm:$0xff]
    %v218 = vld [vmem:[#allocation3 + $0x4d0] sm:$0xff]
    %v219 = vld [vmem:[#allocation3 + $0x4d8] sm:$0xff]
    %v220 = vld [vmem:[#allocation3 + $0x4e0] sm:$0xff]
    %v221 = vld [vmem:[#allocation3 + $0x4e8] sm:$0xff]
    %v222 = vld [vmem:[#allocation3 + $0x4f0] sm:$0xff]
    %v223 = vld [vmem:[#allocation3 + $0x4f8] sm:$0xff]
    %v224 = vld [vmem:[#allocation3 + $0x500] sm:$0xff]
    %v225 = vld [vmem:[#allocation3 + $0x508] sm:$0xff]
    %v226 = vld [vmem:[#allocation3 + $0x510] sm:$0xff]
    %v227 = vld [vmem:[#allocation3 + $0x518] sm:$0xff]
    %v228 = vld [vmem:[#allocation3 + $0x520] sm:$0xff]
    %v229 = vld [vmem:[#allocation3 + $0x528] sm:$0xff]
    %v230 = vld [vmem:[#allocation3 + $0x530] sm:$0xff]
    %v231 = vld [vmem:[#allocation3 + $0x538] sm:$0xff]
    %v232 = vld [vmem:[#allocation3 + $0x540] sm:$0xff]
    %v233 = vld [vmem:[#allocation3 + $0x548] sm:$0xff]
    %v234 = vld [vmem:[#allocation3 + $0x550] sm:$0xff]
    %v235 = vld [vmem:[#allocation3 + $0x558] sm:$0xff]
    %v236 = vld [vmem:[#allocation3 + $0x560] sm:$0xff]
    %v237 = vld [vmem:[#allocation3 + $0x568] sm:$0xff]
    %v238 = vld [vmem:[#allocation3 + $0x570] sm:$0xff]
    %v239 = vld [vmem:[#allocation3 + $0x578] sm:$0xff]
    %v240 = vld [vmem:[#allocation3 + $0x580] sm:$0xff]
    %v241 = vld [vmem:[#allocation3 + $0x588] sm:$0xff]
    %v242 = vld [vmem:[#allocation3 + $0x590] sm:$0xff]
    %v243 = vld [vmem:[#allocation3 + $0x598] sm:$0xff]
    %v244 = vld [vmem:[#allocation3 + $0x5a0] sm:$0xff]
    %v245 = vld [vmem:[#allocation3 + $0x5a8] sm:$0xff]
    %v246 = vld [vmem:[#allocation3 + $0x5b0] sm:$0xff]
    %v247 = vld [vmem:[#allocation3 + $0x5b8] sm:$0xff]
    %v248 = vld [vmem:[#allocation3 + $0x5c0] sm:$0xff]
    %v249 = vld [vmem:[#allocation3 + $0x5c8] sm:$0xff]
    %v250 = vld [vmem:[#allocation3 + $0x5d0] sm:$0xff]
    %v251 = vld [vmem:[#allocation3 + $0x5d8] sm:$0xff]
    %v252 = vld [vmem:[#allocation3 + $0x5e0] sm:$0xff]
    %v253 = vld [vmem:[#allocation3 + $0x5e8] sm:$0xff]
    %v254 = vld [vmem:[#allocation3 + $0x5f0] sm:$0xff]
    %v255 = vld [vmem:[#allocation3 + $0x5f8] sm:$0xff]
    %v256 = vld [vmem:[#allocation3 + $0x600] sm:$0xff]
    %v257 = vld [vmem:[#allocation3 + $0x608] sm:$0xff]
    %v258 = vld [vmem:[#allocation3 + $0x610] sm:$0xff]
    %v259 = vld [vmem:[#allocation3 + $0x618] sm:$0xff]
    %v260 = vld [vmem:[%s1] sm:$0xff]
    %v261 = vlaneseq
    %v262 = vand.u32 %v261, 127
    %263 = vset.pattern.permute.xlu0 0
    %264 = vperm.xlu0 %263, %v260
    %v265 = vpop.permute.xlu0 %264
    %vm266 = vcmp.eq.s32.totalorder %v265, %v262
    %v267 = vsel %vm266, 1, 0
    %v268 = vcvt.s32.f32 %v267
    %v269 = vld [vmem:[%s2] sm:$0xff]
    %v270 = vld [vmem:[%s2 + $0x8] sm:$0xff]
    %v271 = vld [vmem:[%s2 + $0x10] sm:$0xff]
    %v272 = vld [vmem:[%s2 + $0x18] sm:$0xff]
    %v273 = vld [vmem:[%s2 + $0x20] sm:$0xff]
    %v274 = vld [vmem:[%s2 + $0x28] sm:$0xff]
    %v275 = vld [vmem:[%s2 + $0x30] sm:$0xff]
    %v276 = vld [vmem:[%s2 + $0x38] sm:$0xff]
    %vm277 = vcmask 130048
    %v279 = vsel %vm277, %v268, 0
    %281 = vmatprep.subr.mxu0 0.0
    %282 = vmatpush1.msra.mxu0 0.0
    %283 = vmatprep.subr.mxu0 0.0
    %284 = vmatpush1.msra.mxu0 0.0
    %285 = vmatprep.subr.mxu0 0.0
    %286 = vmatpush1.msra.mxu0 0.0
    %287 = vmatprep.subr.mxu0 0.0
    %288 = vmatpush1.msra.mxu0 0.0
    %289 = vmatprep.subr.mxu0 0.0
    %290 = vmatpush1.msra.mxu0 0.0
    %291 = vmatprep.subr.mxu0 0.0
    %292 = vmatpush1.msra.mxu0 0.0
    %293 = vmatprep.subr.mxu0 0.0
    %294 = vmatpush1.msra.mxu0 0.0
    %295 = vmatprep.subr.mxu0 0.0
    %296 = vmatpush1.msra.mxu0 0.0
    %297 = vmatprep.subr.mxu0 0.0
    %298 = vmatpush1.msra.mxu0 0.0
    %299 = vmatprep.subr.mxu0 0.0
    %300 = vmatpush1.msra.mxu0 0.0
    %301 = vmatprep.subr.mxu0 0.0
    %302 = vmatpush1.msra.mxu0 0.0
    %303 = vmatprep.subr.mxu0 0.0
    %304 = vmatpush1.msra.mxu0 0.0
    %305 = vmatprep.subr.mxu0 0.0
    %306 = vmatpush1.msra.mxu0 0.0
    %307 = vmatprep.subr.mxu0 0.0
    %308 = vmatpush1.msra.mxu0 0.0
    %309 = vmatprep.subr.mxu0 %v274
    %310 = vmatpush1.msra.mxu0 %v273
    %311 = vmatprep.subr.mxu0 %v270
    %312 = vmatpush1.msra.mxu0 %v269
    %313 = vmatprep.subr.mxu0 0.0
    %314 = vmatpush2.msra.mxu0 0.0
    %315 = vmatprep.subr.mxu0 0.0
    %316 = vmatpush2.msra.mxu0 0.0
    %317 = vmatprep.subr.mxu0 0.0
    %318 = vmatpush2.msra.mxu0 0.0
    %319 = vmatprep.subr.mxu0 0.0
    %320 = vmatpush2.msra.mxu0 0.0
    %321 = vmatprep.subr.mxu0 0.0
    %322 = vmatpush2.msra.mxu0 0.0
    %323 = vmatprep.subr.mxu0 0.0
    %324 = vmatpush2.msra.mxu0 0.0
    %325 = vmatprep.subr.mxu0 0.0
    %326 = vmatpush2.msra.mxu0 0.0
    %327 = vmatprep.subr.mxu0 0.0
    %328 = vmatpush2.msra.mxu0 0.0
    %329 = vmatprep.subr.mxu0 0.0
    %330 = vmatpush2.msra.mxu0 0.0
    %331 = vmatprep.subr.mxu0 0.0
    %332 = vmatpush2.msra.mxu0 0.0
    %333 = vmatprep.subr.mxu0 0.0
    %334 = vmatpush2.msra.mxu0 0.0
    %335 = vmatprep.subr.mxu0 0.0
    %336 = vmatpush2.msra.mxu0 0.0
    %337 = vmatprep.subr.mxu0 0.0
    %338 = vmatpush2.msra.mxu0 0.0
    %339 = vmatprep.subr.mxu0 0.0
    %340 = vmatpush2.msra.mxu0 0.0
    %341 = vmatprep.subr.mxu0 0.0
    %342 = vmatpush2.msra.mxu0 0.0
    %343 = vmatprep.subr.mxu0 0.0
    %344 = vmatpush2.msra.mxu0 0.0
    %345 = vmatprep.mubr.f32.mxu0 0.0
    %346 = vmatmul.mubr.f32.gmra.mxu0 %v279
    %v347 = vpop.f32.mrf.mxu0
    %v348 = vadd.f32 0.0, %v347
    %v349 = vpop.f32.mrf.mxu0
    %v350 = vadd.f32 0.0, %v349
    %351 = vdwg.mxu0
    %352 = vmatprep.subr.mxu0 0.0
    %353 = vmatpush1.msra.mxu0 0.0
    %354 = vmatprep.subr.mxu0 0.0
    %355 = vmatpush1.msra.mxu0 0.0
    %356 = vmatprep.subr.mxu0 0.0
    %357 = vmatpush1.msra.mxu0 0.0
    %358 = vmatprep.subr.mxu0 0.0
    %359 = vmatpush1.msra.mxu0 0.0
    %360 = vmatprep.subr.mxu0 0.0
    %361 = vmatpush1.msra.mxu0 0.0
    %362 = vmatprep.subr.mxu0 0.0
    %363 = vmatpush1.msra.mxu0 0.0
    %364 = vmatprep.subr.mxu0 0.0
    %365 = vmatpush1.msra.mxu0 0.0
    %366 = vmatprep.subr.mxu0 0.0
    %367 = vmatpush1.msra.mxu0 0.0
    %368 = vmatprep.subr.mxu0 0.0
    %369 = vmatpush1.msra.mxu0 0.0
    %370 = vmatprep.subr.mxu0 0.0
    %371 = vmatpush1.msra.mxu0 0.0
    %372 = vmatprep.subr.mxu0 0.0
    %373 = vmatpush1.msra.mxu0 0.0
    %374 = vmatprep.subr.mxu0 0.0
    %375 = vmatpush1.msra.mxu0 0.0
    %376 = vmatprep.subr.mxu0 0.0
    %377 = vmatpush1.msra.mxu0 0.0
    %378 = vmatprep.subr.mxu0 0.0
    %379 = vmatpush1.msra.mxu0 0.0
    %380 = vmatprep.subr.mxu0 %v276
    %381 = vmatpush1.msra.mxu0 %v275
    %382 = vmatprep.subr.mxu0 %v272
    %383 = vmatpush1.msra.mxu0 %v271
    %384 = vmatprep.subr.mxu0 0.0
    %385 = vmatpush2.msra.mxu0 0.0
    %386 = vmatprep.subr.mxu0 0.0
    %387 = vmatpush2.msra.mxu0 0.0
    %388 = vmatprep.subr.mxu0 0.0
    %389 = vmatpush2.msra.mxu0 0.0
    %390 = vmatprep.subr.mxu0 0.0
    %391 = vmatpush2.msra.mxu0 0.0
    %392 = vmatprep.subr.mxu0 0.0
    %393 = vmatpush2.msra.mxu0 0.0
    %394 = vmatprep.subr.mxu0 0.0
    %395 = vmatpush2.msra.mxu0 0.0
    %396 = vmatprep.subr.mxu0 0.0
    %397 = vmatpush2.msra.mxu0 0.0
    %398 = vmatprep.subr.mxu0 0.0
    %399 = vmatpush2.msra.mxu0 0.0
    %400 = vmatprep.subr.mxu0 0.0
    %401 = vmatpush2.msra.mxu0 0.0
    %402 = vmatprep.subr.mxu0 0.0
    %403 = vmatpush2.msra.mxu0 0.0
    %404 = vmatprep.subr.mxu0 0.0
    %405 = vmatpush2.msra.mxu0 0.0
    %406 = vmatprep.subr.mxu0 0.0
    %407 = vmatpush2.msra.mxu0 0.0
    %408 = vmatprep.subr.mxu0 0.0
    %409 = vmatpush2.msra.mxu0 0.0
    %410 = vmatprep.subr.mxu0 0.0
    %411 = vmatpush2.msra.mxu0 0.0
    %412 = vmatprep.subr.mxu0 0.0
    %413 = vmatpush2.msra.mxu0 0.0
    %414 = vmatprep.subr.mxu0 0.0
    %415 = vmatpush2.msra.mxu0 0.0
    %416 = vmatprep.mubr.f32.mxu0 0.0
    %417 = vmatmul.mubr.f32.gmra.mxu0 %v279
    %v418 = vpop.f32.mrf.mxu0
    %v419 = vadd.f32 0.0, %v418
    %v420 = vpop.f32.mrf.mxu0
    %v421 = vadd.f32 0.0, %v420
    %422 = vdwg.mxu0
    %v427 = vcombine.low %v60, %v61
    %v428 = vcombine.high %v60, %v61
    %v429 = vcombine.low %v62, %v63
    %v430 = vcombine.high %v62, %v63
    %v432 = vunpack.c.l.s4 1966171168
    %v433 = vunpack.c.0.s8 %v432
    %v434 = vlaneseq
    %v435 = vshrl.u32 %v434, 7
    %v436 = vsub.s32 %v433, %v435
    %v437 = vrot.slane %v427, %v436
    %v439 = vunpack.c.l.s4 1966171168
    %v440 = vunpack.c.0.s8 %v439
    %v441 = vlaneseq
    %v442 = vshrl.u32 %v441, 7
    %v443 = vsub.s32 %v440, %v442
    %v444 = vrot.slane %v428, %v443
    %v446 = vunpack.c.l.s4 1966171168
    %v447 = vunpack.c.0.s8 %v446
    %v448 = vlaneseq
    %v449 = vshrl.u32 %v448, 7
    %v450 = vsub.s32 %v447, %v449
    %v451 = vrot.slane %v429, %v450
    %v453 = vunpack.c.l.s4 1966171168
    %v454 = vunpack.c.0.s8 %v453
    %v455 = vlaneseq
    %v456 = vshrl.u32 %v455, 7
    %v457 = vsub.s32 %v454, %v456
    %v458 = vrot.slane %v430, %v457
    %v459 = vcombine.low %v437, %v451
    %v460 = vcombine.high %v437, %v451
    %v461 = vcombine.low %v444, %v458
    %v462 = vcombine.high %v444, %v458
    %v464 = vunpack.c.l.s4 1966171168
    %v465 = vunpack.c.0.s8 %v464
    %v466 = vlaneseq
    %v467 = vshrl.u32 %v466, 7
    %v468 = vsub.s32 %v465, %v467
    %v469 = vrot.slane %v459, %v468
    %v471 = vunpack.c.l.s4 1966171168
    %v472 = vunpack.c.0.s8 %v471
    %v473 = vlaneseq
    %v474 = vshrl.u32 %v473, 7
    %v475 = vsub.s32 %v472, %v474
    %v476 = vrot.slane %v461, %v475
    %v478 = vunpack.c.l.s4 1966171168
    %v479 = vunpack.c.0.s8 %v478
    %v480 = vlaneseq
    %v481 = vshrl.u32 %v480, 7
    %v482 = vsub.s32 %v479, %v481
    %v483 = vrot.slane %v460, %v482
    %v485 = vunpack.c.l.s4 1966171168
    %v486 = vunpack.c.0.s8 %v485
    %v487 = vlaneseq
    %v488 = vshrl.u32 %v487, 7
    %v489 = vsub.s32 %v486, %v488
    %v490 = vrot.slane %v462, %v489
    %v491 = vcombine.high %v469, %v469
    %v492 = vcombine.high %v476, %v476
    %v493 = vcombine.high %v483, %v483
    %v696 = vunpack.c.l.b16 %v64
    %v697 = vunpack.c.h.b16 %v64
    %v698 = vunpack.c.l.b16 %v65
    %v699 = vunpack.c.h.b16 %v65
    %v700 = vunpack.c.l.b16 %v66
    %v701 = vunpack.c.h.b16 %v66
    %v702 = vunpack.c.l.b16 %v67
    %v703 = vunpack.c.h.b16 %v67
    %v704 = vunpack.c.l.b16 %v68
    %v705 = vunpack.c.h.b16 %v68
    %v706 = vunpack.c.l.b16 %v69
    %v707 = vunpack.c.h.b16 %v69
    %v708 = vunpack.c.l.b16 %v70
    %v709 = vunpack.c.h.b16 %v70
    %v710 = vunpack.c.l.b16 %v71
    %v711 = vunpack.c.h.b16 %v71
    %v712 = vunpack.c.l.b16 %v72
    %v713 = vunpack.c.h.b16 %v72
    %v714 = vunpack.c.l.b16 %v73
    %v715 = vunpack.c.h.b16 %v73
    %v716 = vunpack.c.l.b16 %v74
    %v717 = vunpack.c.h.b16 %v74
    %v718 = vunpack.c.l.b16 %v75
    %v719 = vunpack.c.h.b16 %v75
    %v720 = vunpack.c.l.b16 %v76
    %v721 = vunpack.c.h.b16 %v76
    %v722 = vunpack.c.l.b16 %v77
    %v723 = vunpack.c.h.b16 %v77
    %v724 = vunpack.c.l.b16 %v78
    %v725 = vunpack.c.h.b16 %v78
    %v726 = vunpack.c.l.b16 %v79
    %v727 = vunpack.c.h.b16 %v79
    %v728 = vunpack.c.l.b16 %v80
    %v729 = vunpack.c.h.b16 %v80
    %v730 = vunpack.c.l.b16 %v81
    %v731 = vunpack.c.h.b16 %v81
    %v732 = vunpack.c.l.b16 %v82
    %v733 = vunpack.c.h.b16 %v82
    %v734 = vunpack.c.l.b16 %v83
    %v735 = vunpack.c.h.b16 %v83
    %v736 = vunpack.c.l.b16 %v84
    %v737 = vunpack.c.h.b16 %v84
    %v738 = vunpack.c.l.b16 %v85
    %v739 = vunpack.c.h.b16 %v85
    %v740 = vunpack.c.l.b16 %v86
    %v741 = vunpack.c.h.b16 %v86
    %v742 = vunpack.c.l.b16 %v87
    %v743 = vunpack.c.h.b16 %v87
    %v744 = vunpack.c.l.b16 %v88
    %v745 = vunpack.c.h.b16 %v88
    %v746 = vunpack.c.l.b16 %v89
    %v747 = vunpack.c.h.b16 %v89
    %v748 = vunpack.c.l.b16 %v90
    %v749 = vunpack.c.h.b16 %v90
    %v750 = vunpack.c.l.b16 %v91
    %v751 = vunpack.c.h.b16 %v91
    %v752 = vunpack.c.l.b16 %v92
    %v753 = vunpack.c.h.b16 %v92
    %v754 = vunpack.c.l.b16 %v93
    %v755 = vunpack.c.h.b16 %v93
    %v756 = vunpack.c.l.b16 %v94
    %v757 = vunpack.c.h.b16 %v94
    %v758 = vunpack.c.l.b16 %v95
    %v759 = vunpack.c.h.b16 %v95
    %v760 = vunpack.c.l.b16 %v96
    %v761 = vunpack.c.h.b16 %v96
    %v762 = vunpack.c.l.b16 %v97
    %v763 = vunpack.c.h.b16 %v97
    %v764 = vunpack.c.l.b16 %v98
    %v765 = vunpack.c.h.b16 %v98
    %v766 = vunpack.c.l.b16 %v99
    %v767 = vunpack.c.h.b16 %v99
    %v768 = vunpack.c.l.b16 %v100
    %v769 = vunpack.c.h.b16 %v100
    %v770 = vunpack.c.l.b16 %v101
    %v771 = vunpack.c.h.b16 %v101
    %v772 = vunpack.c.l.b16 %v102
    %v773 = vunpack.c.h.b16 %v102
    %v774 = vunpack.c.l.b16 %v103
    %v775 = vunpack.c.h.b16 %v103
    %v776 = vunpack.c.l.b16 %v104
    %v777 = vunpack.c.h.b16 %v104
    %v778 = vunpack.c.l.b16 %v105
    %v779 = vunpack.c.h.b16 %v105
    %v780 = vunpack.c.l.b16 %v106
    %v781 = vunpack.c.h.b16 %v106
    %v782 = vunpack.c.l.b16 %v107
    %v783 = vunpack.c.h.b16 %v107
    %v784 = vunpack.c.l.b16 %v108
    %v785 = vunpack.c.h.b16 %v108
    %v786 = vunpack.c.l.b16 %v109
    %v787 = vunpack.c.h.b16 %v109
    %v788 = vunpack.c.l.b16 %v110
    %v789 = vunpack.c.h.b16 %v110
    %v790 = vunpack.c.l.b16 %v111
    %v791 = vunpack.c.h.b16 %v111
    %v792 = vunpack.c.l.b16 %v112
    %v793 = vunpack.c.h.b16 %v112
    %v794 = vunpack.c.l.b16 %v113
    %v795 = vunpack.c.h.b16 %v113
    %v796 = vunpack.c.l.b16 %v114
    %v797 = vunpack.c.h.b16 %v114
    %v798 = vunpack.c.l.b16 %v115
    %v799 = vunpack.c.h.b16 %v115
    %v800 = vunpack.c.l.b16 %v116
    %v801 = vunpack.c.h.b16 %v116
    %v802 = vunpack.c.l.b16 %v117
    %v803 = vunpack.c.h.b16 %v117
    %v804 = vunpack.c.l.b16 %v118
    %v805 = vunpack.c.h.b16 %v118
    %v806 = vunpack.c.l.b16 %v119
    %v807 = vunpack.c.h.b16 %v119
    %v808 = vunpack.c.l.b16 %v120
    %v809 = vunpack.c.h.b16 %v120
    %v810 = vunpack.c.l.b16 %v121
    %v811 = vunpack.c.h.b16 %v121
    %v812 = vunpack.c.l.b16 %v122
    %v813 = vunpack.c.h.b16 %v122
    %v814 = vunpack.c.l.b16 %v123
    %v815 = vunpack.c.h.b16 %v123
    %v816 = vunpack.c.l.b16 %v124
    %v817 = vunpack.c.h.b16 %v124
    %v818 = vunpack.c.l.b16 %v125
    %v819 = vunpack.c.h.b16 %v125
    %v820 = vunpack.c.l.b16 %v126
    %v821 = vunpack.c.h.b16 %v126
    %v822 = vunpack.c.l.b16 %v127
    %v823 = vunpack.c.h.b16 %v127
    %v824 = vunpack.c.l.b16 %v128
    %v825 = vunpack.c.h.b16 %v128
    %v826 = vunpack.c.l.b16 %v129
    %v827 = vunpack.c.h.b16 %v129
    %v828 = vunpack.c.l.b16 %v130
    %v829 = vunpack.c.h.b16 %v130
    %v830 = vunpack.c.l.b16 %v131
    %v831 = vunpack.c.h.b16 %v131
    %v832 = vunpack.c.l.b16 %v132
    %v833 = vunpack.c.h.b16 %v132
    %v834 = vunpack.c.l.b16 %v133
    %v835 = vunpack.c.h.b16 %v133
    %v836 = vunpack.c.l.b16 %v134
    %v837 = vunpack.c.h.b16 %v134
    %v838 = vunpack.c.l.b16 %v135
    %v839 = vunpack.c.h.b16 %v135
    %v840 = vunpack.c.l.b16 %v136
    %v841 = vunpack.c.h.b16 %v136
    %v842 = vunpack.c.l.b16 %v137
    %v843 = vunpack.c.h.b16 %v137
    %v844 = vunpack.c.l.b16 %v138
    %v845 = vunpack.c.h.b16 %v138
    %v846 = vunpack.c.l.b16 %v139
    %v847 = vunpack.c.h.b16 %v139
    %v848 = vunpack.c.l.b16 %v140
    %v849 = vunpack.c.h.b16 %v140
    %v850 = vunpack.c.l.b16 %v141
    %v851 = vunpack.c.h.b16 %v141
    %v852 = vunpack.c.l.b16 %v142
    %v853 = vunpack.c.h.b16 %v142
    %v854 = vunpack.c.l.b16 %v143
    %v855 = vunpack.c.h.b16 %v143
    %v856 = vunpack.c.l.b16 %v144
    %v857 = vunpack.c.h.b16 %v144
    %v858 = vunpack.c.l.b16 %v145
    %v859 = vunpack.c.h.b16 %v145
    %v860 = vunpack.c.l.b16 %v146
    %v861 = vunpack.c.h.b16 %v146
    %v862 = vunpack.c.l.b16 %v147
    %v863 = vunpack.c.h.b16 %v147
    %v864 = vunpack.c.l.b16 %v148
    %v865 = vunpack.c.h.b16 %v148
    %v866 = vunpack.c.l.b16 %v149
    %v867 = vunpack.c.h.b16 %v149
    %v868 = vunpack.c.l.b16 %v150
    %v869 = vunpack.c.h.b16 %v150
    %v870 = vunpack.c.l.b16 %v151
    %v871 = vunpack.c.h.b16 %v151
    %v872 = vunpack.c.l.b16 %v152
    %v873 = vunpack.c.h.b16 %v152
    %v874 = vunpack.c.l.b16 %v153
    %v875 = vunpack.c.h.b16 %v153
    %v876 = vunpack.c.l.b16 %v154
    %v877 = vunpack.c.h.b16 %v154
    %v878 = vunpack.c.l.b16 %v155
    %v879 = vunpack.c.h.b16 %v155
    %v880 = vunpack.c.l.b16 %v156
    %v881 = vunpack.c.h.b16 %v156
    %v882 = vunpack.c.l.b16 %v157
    %v883 = vunpack.c.h.b16 %v157
    %v884 = vunpack.c.l.b16 %v158
    %v885 = vunpack.c.h.b16 %v158
    %v886 = vunpack.c.l.b16 %v159
    %v887 = vunpack.c.h.b16 %v159
    %v888 = vunpack.c.l.b16 %v160
    %v889 = vunpack.c.h.b16 %v160
    %v890 = vunpack.c.l.b16 %v161
    %v891 = vunpack.c.h.b16 %v161
    %v892 = vunpack.c.l.b16 %v162
    %v893 = vunpack.c.h.b16 %v162
    %v894 = vunpack.c.l.b16 %v163
    %v895 = vunpack.c.h.b16 %v163
    %v896 = vunpack.c.l.b16 %v164
    %v897 = vunpack.c.h.b16 %v164
    %v898 = vunpack.c.l.b16 %v165
    %v899 = vunpack.c.h.b16 %v165
    %v900 = vunpack.c.l.b16 %v166
    %v901 = vunpack.c.h.b16 %v166
    %v902 = vunpack.c.l.b16 %v167
    %v903 = vunpack.c.h.b16 %v167
    %v904 = vunpack.c.l.b16 %v168
    %v905 = vunpack.c.h.b16 %v168
    %v906 = vunpack.c.l.b16 %v169
    %v907 = vunpack.c.h.b16 %v169
    %v908 = vunpack.c.l.b16 %v170
    %v909 = vunpack.c.h.b16 %v170
    %v910 = vunpack.c.l.b16 %v171
    %v911 = vunpack.c.h.b16 %v171
    %v912 = vunpack.c.l.b16 %v172
    %v913 = vunpack.c.h.b16 %v172
    %v914 = vunpack.c.l.b16 %v173
    %v915 = vunpack.c.h.b16 %v173
    %v916 = vunpack.c.l.b16 %v174
    %v917 = vunpack.c.h.b16 %v174
    %v918 = vunpack.c.l.b16 %v175
    %v919 = vunpack.c.h.b16 %v175
    %v920 = vunpack.c.l.b16 %v176
    %v921 = vunpack.c.h.b16 %v176
    %v922 = vunpack.c.l.b16 %v177
    %v923 = vunpack.c.h.b16 %v177
    %v924 = vunpack.c.l.b16 %v178
    %v925 = vunpack.c.h.b16 %v178
    %v926 = vunpack.c.l.b16 %v179
    %v927 = vunpack.c.h.b16 %v179
    %v928 = vunpack.c.l.b16 %v180
    %v929 = vunpack.c.h.b16 %v180
    %v930 = vunpack.c.l.b16 %v181
    %v931 = vunpack.c.h.b16 %v181
    %v932 = vunpack.c.l.b16 %v182
    %v933 = vunpack.c.h.b16 %v182
    %v934 = vunpack.c.l.b16 %v183
    %v935 = vunpack.c.h.b16 %v183
    %v936 = vunpack.c.l.b16 %v184
    %v937 = vunpack.c.h.b16 %v184
    %v938 = vunpack.c.l.b16 %v185
    %v939 = vunpack.c.h.b16 %v185
    %v940 = vunpack.c.l.b16 %v186
    %v941 = vunpack.c.h.b16 %v186
    %v942 = vunpack.c.l.b16 %v187
    %v943 = vunpack.c.h.b16 %v187
    %v944 = vunpack.c.l.b16 %v188
    %v945 = vunpack.c.h.b16 %v188
    %v946 = vunpack.c.l.b16 %v189
    %v947 = vunpack.c.h.b16 %v189
    %v948 = vunpack.c.l.b16 %v190
    %v949 = vunpack.c.h.b16 %v190
    %v950 = vunpack.c.l.b16 %v191
    %v951 = vunpack.c.h.b16 %v191
    %v952 = vunpack.c.l.b16 %v192
    %v953 = vunpack.c.h.b16 %v192
    %v954 = vunpack.c.l.b16 %v193
    %v955 = vunpack.c.h.b16 %v193
    %v956 = vunpack.c.l.b16 %v194
    %v957 = vunpack.c.h.b16 %v194
    %v958 = vunpack.c.l.b16 %v195
    %v959 = vunpack.c.h.b16 %v195
    %v960 = vunpack.c.l.b16 %v196
    %v961 = vunpack.c.h.b16 %v196
    %v962 = vunpack.c.l.b16 %v197
    %v963 = vunpack.c.h.b16 %v197
    %v964 = vunpack.c.l.b16 %v198
    %v965 = vunpack.c.h.b16 %v198
    %v966 = vunpack.c.l.b16 %v199
    %v967 = vunpack.c.h.b16 %v199
    %v968 = vunpack.c.l.b16 %v200
    %v969 = vunpack.c.h.b16 %v200
    %v970 = vunpack.c.l.b16 %v201
    %v971 = vunpack.c.h.b16 %v201
    %v972 = vunpack.c.l.b16 %v202
    %v973 = vunpack.c.h.b16 %v202
    %v974 = vunpack.c.l.b16 %v203
    %v975 = vunpack.c.h.b16 %v203
    %v976 = vunpack.c.l.b16 %v204
    %v977 = vunpack.c.h.b16 %v204
    %v978 = vunpack.c.l.b16 %v205
    %v979 = vunpack.c.h.b16 %v205
    %v980 = vunpack.c.l.b16 %v206
    %v981 = vunpack.c.h.b16 %v206
    %v982 = vunpack.c.l.b16 %v207
    %v983 = vunpack.c.h.b16 %v207
    %v984 = vunpack.c.l.b16 %v208
    %v985 = vunpack.c.h.b16 %v208
    %v986 = vunpack.c.l.b16 %v209
    %v987 = vunpack.c.h.b16 %v209
    %v988 = vunpack.c.l.b16 %v210
    %v989 = vunpack.c.h.b16 %v210
    %v990 = vunpack.c.l.b16 %v211
    %v991 = vunpack.c.h.b16 %v211
    %v992 = vunpack.c.l.b16 %v212
    %v993 = vunpack.c.h.b16 %v212
    %v994 = vunpack.c.l.b16 %v213
    %v995 = vunpack.c.h.b16 %v213
    %v996 = vunpack.c.l.b16 %v214
    %v997 = vunpack.c.h.b16 %v214
    %v998 = vunpack.c.l.b16 %v215
    %v999 = vunpack.c.h.b16 %v215
    %v1000 = vunpack.c.l.b16 %v216
    %v1001 = vunpack.c.h.b16 %v216
    %v1002 = vunpack.c.l.b16 %v217
    %v1003 = vunpack.c.h.b16 %v217
    %v1004 = vunpack.c.l.b16 %v218
    %v1005 = vunpack.c.h.b16 %v218
    %v1006 = vunpack.c.l.b16 %v219
    %v1007 = vunpack.c.h.b16 %v219
    %v1008 = vunpack.c.l.b16 %v220
    %v1009 = vunpack.c.h.b16 %v220
    %v1010 = vunpack.c.l.b16 %v221
    %v1011 = vunpack.c.h.b16 %v221
    %v1012 = vunpack.c.l.b16 %v222
    %v1013 = vunpack.c.h.b16 %v222
    %v1014 = vunpack.c.l.b16 %v223
    %v1015 = vunpack.c.h.b16 %v223
    %v1016 = vunpack.c.l.b16 %v224
    %v1017 = vunpack.c.h.b16 %v224
    %v1018 = vunpack.c.l.b16 %v225
    %v1019 = vunpack.c.h.b16 %v225
    %v1020 = vunpack.c.l.b16 %v226
    %v1021 = vunpack.c.h.b16 %v226
    %v1022 = vunpack.c.l.b16 %v227
    %v1023 = vunpack.c.h.b16 %v227
    %v1024 = vunpack.c.l.b16 %v228
    %v1025 = vunpack.c.h.b16 %v228
    %v1026 = vunpack.c.l.b16 %v229
    %v1027 = vunpack.c.h.b16 %v229
    %v1028 = vunpack.c.l.b16 %v230
    %v1029 = vunpack.c.h.b16 %v230
    %v1030 = vunpack.c.l.b16 %v231
    %v1031 = vunpack.c.h.b16 %v231
    %v1032 = vunpack.c.l.b16 %v232
    %v1033 = vunpack.c.h.b16 %v232
    %v1034 = vunpack.c.l.b16 %v233
    %v1035 = vunpack.c.h.b16 %v233
    %v1036 = vunpack.c.l.b16 %v234
    %v1037 = vunpack.c.h.b16 %v234
    %v1038 = vunpack.c.l.b16 %v235
    %v1039 = vunpack.c.h.b16 %v235
    %v1040 = vunpack.c.l.b16 %v236
    %v1041 = vunpack.c.h.b16 %v236
    %v1042 = vunpack.c.l.b16 %v237
    %v1043 = vunpack.c.h.b16 %v237
    %v1044 = vunpack.c.l.b16 %v238
    %v1045 = vunpack.c.h.b16 %v238
    %v1046 = vunpack.c.l.b16 %v239
    %v1047 = vunpack.c.h.b16 %v239
    %v1048 = vunpack.c.l.b16 %v240
    %v1049 = vunpack.c.h.b16 %v240
    %v1050 = vunpack.c.l.b16 %v241
    %v1051 = vunpack.c.h.b16 %v241
    %v1052 = vunpack.c.l.b16 %v242
    %v1053 = vunpack.c.h.b16 %v242
    %v1054 = vunpack.c.l.b16 %v243
    %v1055 = vunpack.c.h.b16 %v243
    %v1056 = vunpack.c.l.b16 %v244
    %v1057 = vunpack.c.h.b16 %v244
    %v1058 = vunpack.c.l.b16 %v245
    %v1059 = vunpack.c.h.b16 %v245
    %v1060 = vunpack.c.l.b16 %v246
    %v1061 = vunpack.c.h.b16 %v246
    %v1062 = vunpack.c.l.b16 %v247
    %v1063 = vunpack.c.h.b16 %v247
    %v1064 = vunpack.c.l.b16 %v248
    %v1065 = vunpack.c.h.b16 %v248
    %v1066 = vunpack.c.l.b16 %v249
    %v1067 = vunpack.c.h.b16 %v249
    %v1068 = vunpack.c.l.b16 %v250
    %v1069 = vunpack.c.h.b16 %v250
    %v1070 = vunpack.c.l.b16 %v251
    %v1071 = vunpack.c.h.b16 %v251
    %v1072 = vunpack.c.l.b16 %v252
    %v1073 = vunpack.c.h.b16 %v252
    %v1074 = vunpack.c.l.b16 %v253
    %v1075 = vunpack.c.h.b16 %v253
    %v1076 = vunpack.c.l.b16 %v254
    %v1077 = vunpack.c.h.b16 %v254
    %v1078 = vunpack.c.l.b16 %v255
    %v1079 = vunpack.c.h.b16 %v255
    %v1080 = vunpack.c.l.b16 %v256
    %v1081 = vunpack.c.h.b16 %v256
    %v1082 = vunpack.c.l.b16 %v257
    %v1083 = vunpack.c.h.b16 %v257
    %v1084 = vunpack.c.l.b16 %v258
    %v1085 = vunpack.c.h.b16 %v258
    %v1086 = vunpack.c.l.b16 %v259
    %v1087 = vunpack.c.h.b16 %v259
    %v1088 = vpack.c.b16 %v700, %v696
    %v1089 = vpack.c.b16 %v701, %v697
    %v1090 = vpack.c.b16 %v702, %v698
    %v1091 = vpack.c.b16 %v703, %v699
    %v1092 = vpack.c.b16 %v708, %v704
    %v1093 = vpack.c.b16 %v709, %v705
    %v1094 = vpack.c.b16 %v710, %v706
    %v1095 = vpack.c.b16 %v711, %v707
    %v1096 = vpack.c.b16 %v716, %v712
    %v1097 = vpack.c.b16 %v717, %v713
    %v1098 = vpack.c.b16 %v718, %v714
    %v1099 = vpack.c.b16 %v719, %v715
    %v1100 = vpack.c.b16 %v724, %v720
    %v1101 = vpack.c.b16 %v725, %v721
    %v1102 = vpack.c.b16 %v726, %v722
    %v1103 = vpack.c.b16 %v727, %v723
    %v1104 = vpack.c.b16 %v732, %v728
    %v1105 = vpack.c.b16 %v733, %v729
    %v1106 = vpack.c.b16 %v734, %v730
    %v1107 = vpack.c.b16 %v735, %v731
    %v1108 = vpack.c.b16 %v740, %v736
    %v1109 = vpack.c.b16 %v741, %v737
    %v1110 = vpack.c.b16 %v742, %v738
    %v1111 = vpack.c.b16 %v743, %v739
    %v1112 = vpack.c.b16 %v748, %v744
    %v1113 = vpack.c.b16 %v749, %v745
    %v1114 = vpack.c.b16 %v750, %v746
    %v1115 = vpack.c.b16 %v751, %v747
    %v1116 = vpack.c.b16 %v756, %v752
    %v1117 = vpack.c.b16 %v757, %v753
    %v1118 = vpack.c.b16 %v758, %v754
    %v1119 = vpack.c.b16 %v759, %v755
    %v1120 = vpack.c.b16 %v764, %v760
    %v1121 = vpack.c.b16 %v765, %v761
    %v1122 = vpack.c.b16 %v766, %v762
    %v1123 = vpack.c.b16 %v767, %v763
    %v1124 = vpack.c.b16 %v772, %v768
    %v1125 = vpack.c.b16 %v773, %v769
    %v1126 = vpack.c.b16 %v774, %v770
    %v1127 = vpack.c.b16 %v775, %v771
    %v1128 = vpack.c.b16 %v780, %v776
    %v1129 = vpack.c.b16 %v781, %v777
    %v1130 = vpack.c.b16 %v782, %v778
    %v1131 = vpack.c.b16 %v783, %v779
    %v1132 = vpack.c.b16 %v788, %v784
    %v1133 = vpack.c.b16 %v789, %v785
    %v1134 = vpack.c.b16 %v790, %v786
    %v1135 = vpack.c.b16 %v791, %v787
    %v1136 = vpack.c.b16 %v796, %v792
    %v1137 = vpack.c.b16 %v797, %v793
    %v1138 = vpack.c.b16 %v798, %v794
    %v1139 = vpack.c.b16 %v799, %v795
    %v1140 = vpack.c.b16 %v804, %v800
    %v1141 = vpack.c.b16 %v805, %v801
    %v1142 = vpack.c.b16 %v806, %v802
    %v1143 = vpack.c.b16 %v807, %v803
    %v1144 = vpack.c.b16 %v812, %v808
    %v1145 = vpack.c.b16 %v813, %v809
    %v1146 = vpack.c.b16 %v814, %v810
    %v1147 = vpack.c.b16 %v815, %v811
    %v1148 = vpack.c.b16 %v820, %v816
    %v1149 = vpack.c.b16 %v821, %v817
    %v1150 = vpack.c.b16 %v822, %v818
    %v1151 = vpack.c.b16 %v823, %v819
    %v1152 = vpack.c.b16 %v828, %v824
    %v1153 = vpack.c.b16 %v829, %v825
    %v1154 = vpack.c.b16 %v830, %v826
    %v1155 = vpack.c.b16 %v831, %v827
    %v1156 = vpack.c.b16 %v836, %v832
    %v1157 = vpack.c.b16 %v837, %v833
    %v1158 = vpack.c.b16 %v838, %v834
    %v1159 = vpack.c.b16 %v839, %v835
    %v1160 = vpack.c.b16 %v844, %v840
    %v1161 = vpack.c.b16 %v845, %v841
    %v1162 = vpack.c.b16 %v846, %v842
    %v1163 = vpack.c.b16 %v847, %v843
    %v1164 = vpack.c.b16 %v852, %v848
    %v1165 = vpack.c.b16 %v853, %v849
    %v1166 = vpack.c.b16 %v854, %v850
    %v1167 = vpack.c.b16 %v855, %v851
    %v1168 = vpack.c.b16 %v860, %v856
    %v1169 = vpack.c.b16 %v861, %v857
    %v1170 = vpack.c.b16 %v862, %v858
    %v1171 = vpack.c.b16 %v863, %v859
    %v1172 = vpack.c.b16 %v868, %v864
    %v1173 = vpack.c.b16 %v869, %v865
    %v1174 = vpack.c.b16 %v870, %v866
    %v1175 = vpack.c.b16 %v871, %v867
    %v1176 = vpack.c.b16 %v876, %v872
    %v1177 = vpack.c.b16 %v877, %v873
    %v1178 = vpack.c.b16 %v878, %v874
    %v1179 = vpack.c.b16 %v879, %v875
    %v1180 = vpack.c.b16 %v884, %v880
    %v1181 = vpack.c.b16 %v885, %v881
    %v1182 = vpack.c.b16 %v886, %v882
    %v1183 = vpack.c.b16 %v887, %v883
    %v1184 = vpack.c.b16 %v892, %v888
    %v1185 = vpack.c.b16 %v893, %v889
    %v1186 = vpack.c.b16 %v894, %v890
    %v1187 = vpack.c.b16 %v895, %v891
    %v1188 = vpack.c.b16 %v900, %v896
    %v1189 = vpack.c.b16 %v901, %v897
    %v1190 = vpack.c.b16 %v902, %v898
    %v1191 = vpack.c.b16 %v903, %v899
    %v1192 = vpack.c.b16 %v908, %v904
    %v1193 = vpack.c.b16 %v909, %v905
    %v1194 = vpack.c.b16 %v910, %v906
    %v1195 = vpack.c.b16 %v911, %v907
    %v1196 = vpack.c.b16 %v916, %v912
    %v1197 = vpack.c.b16 %v917, %v913
    %v1198 = vpack.c.b16 %v918, %v914
    %v1199 = vpack.c.b16 %v919, %v915
    %v1200 = vpack.c.b16 %v924, %v920
    %v1201 = vpack.c.b16 %v925, %v921
    %v1202 = vpack.c.b16 %v926, %v922
    %v1203 = vpack.c.b16 %v927, %v923
    %v1204 = vpack.c.b16 %v932, %v928
    %v1205 = vpack.c.b16 %v933, %v929
    %v1206 = vpack.c.b16 %v934, %v930
    %v1207 = vpack.c.b16 %v935, %v931
    %v1208 = vpack.c.b16 %v940, %v936
    %v1209 = vpack.c.b16 %v941, %v937
    %v1210 = vpack.c.b16 %v942, %v938
    %v1211 = vpack.c.b16 %v943, %v939
    %v1212 = vpack.c.b16 %v948, %v944
    %v1213 = vpack.c.b16 %v949, %v945
    %v1214 = vpack.c.b16 %v950, %v946
    %v1215 = vpack.c.b16 %v951, %v947
    %v1216 = vpack.c.b16 %v956, %v952
    %v1217 = vpack.c.b16 %v957, %v953
    %v1218 = vpack.c.b16 %v958, %v954
    %v1219 = vpack.c.b16 %v959, %v955
    %v1220 = vpack.c.b16 %v964, %v960
    %v1221 = vpack.c.b16 %v965, %v961
    %v1222 = vpack.c.b16 %v966, %v962
    %v1223 = vpack.c.b16 %v967, %v963
    %v1224 = vpack.c.b16 %v972, %v968
    %v1225 = vpack.c.b16 %v973, %v969
    %v1226 = vpack.c.b16 %v974, %v970
    %v1227 = vpack.c.b16 %v975, %v971
    %v1228 = vpack.c.b16 %v980, %v976
    %v1229 = vpack.c.b16 %v981, %v977
    %v1230 = vpack.c.b16 %v982, %v978
    %v1231 = vpack.c.b16 %v983, %v979
    %v1232 = vpack.c.b16 %v988, %v984
    %v1233 = vpack.c.b16 %v989, %v985
    %v1234 = vpack.c.b16 %v990, %v986
    %v1235 = vpack.c.b16 %v991, %v987
    %v1236 = vpack.c.b16 %v996, %v992
    %v1237 = vpack.c.b16 %v997, %v993
    %v1238 = vpack.c.b16 %v998, %v994
    %v1239 = vpack.c.b16 %v999, %v995
    %v1240 = vpack.c.b16 %v1004, %v1000
    %v1241 = vpack.c.b16 %v1005, %v1001
    %v1242 = vpack.c.b16 %v1006, %v1002
    %v1243 = vpack.c.b16 %v1007, %v1003
    %v1244 = vpack.c.b16 %v1012, %v1008
    %v1245 = vpack.c.b16 %v1013, %v1009
    %v1246 = vpack.c.b16 %v1014, %v1010
    %v1247 = vpack.c.b16 %v1015, %v1011
    %v1248 = vpack.c.b16 %v1020, %v1016
    %v1249 = vpack.c.b16 %v1021, %v1017
    %v1250 = vpack.c.b16 %v1022, %v1018
    %v1251 = vpack.c.b16 %v1023, %v1019
    %v1252 = vpack.c.b16 %v1028, %v1024
    %v1253 = vpack.c.b16 %v1029, %v1025
    %v1254 = vpack.c.b16 %v1030, %v1026
    %v1255 = vpack.c.b16 %v1031, %v1027
    %v1256 = vpack.c.b16 %v1036, %v1032
    %v1257 = vpack.c.b16 %v1037, %v1033
    %v1258 = vpack.c.b16 %v1038, %v1034
    %v1259 = vpack.c.b16 %v1039, %v1035
    %v1260 = vpack.c.b16 %v1044, %v1040
    %v1261 = vpack.c.b16 %v1045, %v1041
    %v1262 = vpack.c.b16 %v1046, %v1042
    %v1263 = vpack.c.b16 %v1047, %v1043
    %v1264 = vpack.c.b16 %v1052, %v1048
    %v1265 = vpack.c.b16 %v1053, %v1049
    %v1266 = vpack.c.b16 %v1054, %v1050
    %v1267 = vpack.c.b16 %v1055, %v1051
    %v1268 = vpack.c.b16 %v1060, %v1056
    %v1269 = vpack.c.b16 %v1061, %v1057
    %v1270 = vpack.c.b16 %v1062, %v1058
    %v1271 = vpack.c.b16 %v1063, %v1059
    %v1272 = vpack.c.b16 %v1068, %v1064
    %v1273 = vpack.c.b16 %v1069, %v1065
    %v1274 = vpack.c.b16 %v1070, %v1066
    %v1275 = vpack.c.b16 %v1071, %v1067
    %v1276 = vpack.c.b16 %v1076, %v1072
    %v1277 = vpack.c.b16 %v1077, %v1073
    %v1278 = vpack.c.b16 %v1078, %v1074
    %v1279 = vpack.c.b16 %v1079, %v1075
    %v1280 = vpack.c.b16 %v1084, %v1080
    %v1281 = vpack.c.b16 %v1085, %v1081
    %v1282 = vpack.c.b16 %v1086, %v1082
    %v1283 = vpack.c.b16 %v1087, %v1083
    %v1481 = vsel %vm277, %v492, 0
    %1483 = vmatprep.subr.bf16.mxu0 %v1117
    %1484 = vmatpush1.bf16.msra.mxu0 %v1116
    %1485 = vmatprep.subr.bf16.mxu0 %v1113
    %1486 = vmatpush1.bf16.msra.mxu0 %v1112
    %1487 = vmatprep.subr.bf16.mxu0 %v1109
    %1488 = vmatpush1.bf16.msra.mxu0 %v1108
    %1489 = vmatprep.subr.bf16.mxu0 %v1105
    %1490 = vmatpush1.bf16.msra.mxu0 %v1104
    %1491 = vmatprep.subr.bf16.mxu0 %v1101
    %1492 = vmatpush1.bf16.msra.mxu0 %v1100
    %1493 = vmatprep.subr.bf16.mxu0 %v1097
    %1494 = vmatpush1.bf16.msra.mxu0 %v1096
    %1495 = vmatprep.subr.bf16.mxu0 %v1093
    %1496 = vmatpush1.bf16.msra.mxu0 %v1092
    %1497 = vmatprep.subr.bf16.mxu0 %v1089
    %1498 = vmatpush1.bf16.msra.mxu0 %v1088
    %1499 = vmatprep.subr.bf16.mxu0 %v1149
    %1500 = vmatpush2.bf16.msra.mxu0 %v1148
    %1501 = vmatprep.subr.bf16.mxu0 %v1145
    %1502 = vmatpush2.bf16.msra.mxu0 %v1144
    %1503 = vmatprep.subr.bf16.mxu0 %v1141
    %1504 = vmatpush2.bf16.msra.mxu0 %v1140
    %1505 = vmatprep.subr.bf16.mxu0 %v1137
    %1506 = vmatpush2.bf16.msra.mxu0 %v1136
    %1507 = vmatprep.subr.bf16.mxu0 %v1133
    %1508 = vmatpush2.bf16.msra.mxu0 %v1132
    %1509 = vmatprep.subr.bf16.mxu0 %v1129
    %1510 = vmatpush2.bf16.msra.mxu0 %v1128
    %1511 = vmatprep.subr.bf16.mxu0 %v1125
    %1512 = vmatpush2.bf16.msra.mxu0 %v1124
    %1513 = vmatprep.subr.bf16.mxu0 %v1121
    %1514 = vmatpush2.bf16.msra.mxu0 %v1120
    %1515 = vmatprep.mubr.bf16.mxu0 %v483
    %1516 = vmatmul.mubr.bf16.gmra.mxu0 %v469
    %v1517 = vpop.f32.mrf.mxu0
    %v1518 = vadd.f32 %v348, %v1517
    %v1519 = vpop.f32.mrf.mxu0
    %v1520 = vadd.f32 %v350, %v1519
    %v1521 = vpop.f32.mrf.mxu0
    %v1522 = vpop.f32.mrf.mxu0
    %1523 = vdwg.mxu0
    %1524 = vmatprep.subr.bf16.mxu0 %v1181
    %1525 = vmatpush1.bf16.msra.mxu0 %v1180
    %1526 = vmatprep.subr.bf16.mxu0 %v1177
    %1527 = vmatpush1.bf16.msra.mxu0 %v1176
    %1528 = vmatprep.subr.bf16.mxu0 %v1173
    %1529 = vmatpush1.bf16.msra.mxu0 %v1172
    %1530 = vmatprep.subr.bf16.mxu0 %v1169
    %1531 = vmatpush1.bf16.msra.mxu0 %v1168
    %1532 = vmatprep.subr.bf16.mxu0 %v1165
    %1533 = vmatpush1.bf16.msra.mxu0 %v1164
    %1534 = vmatprep.subr.bf16.mxu0 %v1161
    %1535 = vmatpush1.bf16.msra.mxu0 %v1160
    %1536 = vmatprep.subr.bf16.mxu0 %v1157
    %1537 = vmatpush1.bf16.msra.mxu0 %v1156
    %1538 = vmatprep.subr.bf16.mxu0 %v1153
    %1539 = vmatpush1.bf16.msra.mxu0 %v1152
    %1540 = vmatprep.subr.bf16.mxu0 %v1213
    %1541 = vmatpush2.bf16.msra.mxu0 %v1212
    %1542 = vmatprep.subr.bf16.mxu0 %v1209
    %1543 = vmatpush2.bf16.msra.mxu0 %v1208
    %1544 = vmatprep.subr.bf16.mxu0 %v1205
    %1545 = vmatpush2.bf16.msra.mxu0 %v1204
    %1546 = vmatprep.subr.bf16.mxu0 %v1201
    %1547 = vmatpush2.bf16.msra.mxu0 %v1200
    %1548 = vmatprep.subr.bf16.mxu0 %v1197
    %1549 = vmatpush2.bf16.msra.mxu0 %v1196
    %1550 = vmatprep.subr.bf16.mxu0 %v1193
    %1551 = vmatpush2.bf16.msra.mxu0 %v1192
    %1552 = vmatprep.subr.bf16.mxu0 %v1189
    %1553 = vmatpush2.bf16.msra.mxu0 %v1188
    %1554 = vmatprep.subr.bf16.mxu0 %v1185
    %1555 = vmatpush2.bf16.msra.mxu0 %v1184
    %1556 = vmatprep.mubr.bf16.mxu0 %v493
    %1557 = vmatmul.mubr.bf16.gmra.mxu0 %v491
    %v1558 = vpop.f32.mrf.mxu0
    %v1559 = vadd.f32 %v1518, %v1558
    %v1560 = vpop.f32.mrf.mxu0
    %v1561 = vadd.f32 %v1520, %v1560
    %v1562 = vpop.f32.mrf.mxu0
    %v1563 = vpop.f32.mrf.mxu0
    %1564 = vdwg.mxu0
    %1565 = vmatprep.subr.bf16.mxu0 %v1245
    %1566 = vmatpush1.bf16.msra.mxu0 %v1244
    %1567 = vmatprep.subr.bf16.mxu0 %v1241
    %1568 = vmatpush1.bf16.msra.mxu0 %v1240
    %1569 = vmatprep.subr.bf16.mxu0 %v1237
    %1570 = vmatpush1.bf16.msra.mxu0 %v1236
    %1571 = vmatprep.subr.bf16.mxu0 %v1233
    %1572 = vmatpush1.bf16.msra.mxu0 %v1232
    %1573 = vmatprep.subr.bf16.mxu0 %v1229
    %1574 = vmatpush1.bf16.msra.mxu0 %v1228
    %1575 = vmatprep.subr.bf16.mxu0 %v1225
    %1576 = vmatpush1.bf16.msra.mxu0 %v1224
    %1577 = vmatprep.subr.bf16.mxu0 %v1221
    %1578 = vmatpush1.bf16.msra.mxu0 %v1220
    %1579 = vmatprep.subr.bf16.mxu0 %v1217
    %1580 = vmatpush1.bf16.msra.mxu0 %v1216
    %1581 = vmatprep.subr.bf16.mxu0 %v1277
    %1582 = vmatpush2.bf16.msra.mxu0 %v1276
    %1583 = vmatprep.subr.bf16.mxu0 %v1273
    %1584 = vmatpush2.bf16.msra.mxu0 %v1272
    %1585 = vmatprep.subr.bf16.mxu0 %v1269
    %1586 = vmatpush2.bf16.msra.mxu0 %v1268
    %1587 = vmatprep.subr.bf16.mxu0 %v1265
    %1588 = vmatpush2.bf16.msra.mxu0 %v1264
    %1589 = vmatprep.subr.bf16.mxu0 %v1261
    %1590 = vmatpush2.bf16.msra.mxu0 %v1260
    %1591 = vmatprep.subr.bf16.mxu0 %v1257
    %1592 = vmatpush2.bf16.msra.mxu0 %v1256
    %1593 = vmatprep.subr.bf16.mxu0 %v1253
    %1594 = vmatpush2.bf16.msra.mxu0 %v1252
    %1595 = vmatprep.subr.bf16.mxu0 %v1249
    %1596 = vmatpush2.bf16.msra.mxu0 %v1248
    %1597 = vmatprep.mubr.bf16.mxu0 %v490
    %1598 = vmatmul.mubr.bf16.gmra.mxu0 %v476
    %v1599 = vpop.f32.mrf.mxu0
    %v1600 = vadd.f32 %v1559, %v1599
    %v1601 = vpop.f32.mrf.mxu0
    %v1602 = vadd.f32 %v1561, %v1601
    %v1603 = vpop.f32.mrf.mxu0
    %v1604 = vpop.f32.mrf.mxu0
    %1605 = vdwg.mxu0
    %1606 = vmatprep.subr.bf16.mxu0 0
    %1607 = vmatpush1.bf16.msra.mxu0 0
    %1608 = vmatprep.subr.bf16.mxu0 0
    %1609 = vmatpush1.bf16.msra.mxu0 0
    %1610 = vmatprep.subr.bf16.mxu0 0
    %1611 = vmatpush1.bf16.msra.mxu0 0
    %1612 = vmatprep.subr.bf16.mxu0 0
    %1613 = vmatpush1.bf16.msra.mxu0 0
    %1614 = vmatprep.subr.bf16.mxu0 0
    %1615 = vmatpush1.bf16.msra.mxu0 0
    %1616 = vmatprep.subr.bf16.mxu0 0
    %1617 = vmatpush1.bf16.msra.mxu0 0
    %1618 = vmatprep.subr.bf16.mxu0 0
    %1619 = vmatpush1.bf16.msra.mxu0 0
    %1620 = vmatprep.subr.bf16.mxu0 %v1281
    %1621 = vmatpush1.bf16.msra.mxu0 %v1280
    %1622 = vmatprep.subr.bf16.mxu0 0
    %1623 = vmatpush2.bf16.msra.mxu0 0
    %1624 = vmatprep.subr.bf16.mxu0 0
    %1625 = vmatpush2.bf16.msra.mxu0 0
    %1626 = vmatprep.subr.bf16.mxu0 0
    %1627 = vmatpush2.bf16.msra.mxu0 0
    %1628 = vmatprep.subr.bf16.mxu0 0
    %1629 = vmatpush2.bf16.msra.mxu0 0
    %1630 = vmatprep.subr.bf16.mxu0 0
    %1631 = vmatpush2.bf16.msra.mxu0 0
    %1632 = vmatprep.subr.bf16.mxu0 0
    %1633 = vmatpush2.bf16.msra.mxu0 0
    %1634 = vmatprep.subr.bf16.mxu0 0
    %1635 = vmatpush2.bf16.msra.mxu0 0
    %1636 = vmatprep.subr.bf16.mxu0 0
    %1637 = vmatpush2.bf16.msra.mxu0 0
    %1638 = vmatprep.mubr.bf16.mxu0 0
    %1639 = vmatmul.mubr.bf16.gmra.mxu0 %v1481
    %v1640 = vpop.f32.mrf.mxu0
    %v1641 = vadd.f32 %v1600, %v1640
    %v1642 = vpop.f32.mrf.mxu0
    %v1643 = vadd.f32 %v1602, %v1642
    %v1644 = vpop.f32.mrf.mxu0
    %v1645 = vpop.f32.mrf.mxu0
    %1646 = vdwg.mxu0
    %1647 = vmatprep.subr.bf16.mxu0 %v1119
    %1648 = vmatpush1.bf16.msra.mxu0 %v1118
    %1649 = vmatprep.subr.bf16.mxu0 %v1115
    %1650 = vmatpush1.bf16.msra.mxu0 %v1114
    %1651 = vmatprep.subr.bf16.mxu0 %v1111
    %1652 = vmatpush1.bf16.msra.mxu0 %v1110
    %1653 = vmatprep.subr.bf16.mxu0 %v1107
    %1654 = vmatpush1.bf16.msra.mxu0 %v1106
    %1655 = vmatprep.subr.bf16.mxu0 %v1103
    %1656 = vmatpush1.bf16.msra.mxu0 %v1102
    %1657 = vmatprep.subr.bf16.mxu0 %v1099
    %1658 = vmatpush1.bf16.msra.mxu0 %v1098
    %1659 = vmatprep.subr.bf16.mxu0 %v1095
    %1660 = vmatpush1.bf16.msra.mxu0 %v1094
    %1661 = vmatprep.subr.bf16.mxu0 %v1091
    %1662 = vmatpush1.bf16.msra.mxu0 %v1090
    %1663 = vmatprep.subr.bf16.mxu0 %v1151
    %1664 = vmatpush2.bf16.msra.mxu0 %v1150
    %1665 = vmatprep.subr.bf16.mxu0 %v1147
    %1666 = vmatpush2.bf16.msra.mxu0 %v1146
    %1667 = vmatprep.subr.bf16.mxu0 %v1143
    %1668 = vmatpush2.bf16.msra.mxu0 %v1142
    %1669 = vmatprep.subr.bf16.mxu0 %v1139
    %1670 = vmatpush2.bf16.msra.mxu0 %v1138
    %1671 = vmatprep.subr.bf16.mxu0 %v1135
    %1672 = vmatpush2.bf16.msra.mxu0 %v1134
    %1673 = vmatprep.subr.bf16.mxu0 %v1131
    %1674 = vmatpush2.bf16.msra.mxu0 %v1130
    %1675 = vmatprep.subr.bf16.mxu0 %v1127
    %1676 = vmatpush2.bf16.msra.mxu0 %v1126
    %1677 = vmatprep.subr.bf16.mxu0 %v1123
    %1678 = vmatpush2.bf16.msra.mxu0 %v1122
    %1679 = vmatprep.mubr.bf16.mxu0 %v483
    %1680 = vmatmul.mubr.bf16.gmra.mxu0 %v469
    %v1681 = vpop.f32.mrf.mxu0
    %v1682 = vadd.f32 %v419, %v1681
    %v1683 = vpop.f32.mrf.mxu0
    %v1684 = vadd.f32 %v421, %v1683
    %v1685 = vpop.f32.mrf.mxu0
    %v1686 = vpop.f32.mrf.mxu0
    %1687 = vdwg.mxu0
    %1688 = vmatprep.subr.bf16.mxu0 %v1183
    %1689 = vmatpush1.bf16.msra.mxu0 %v1182
    %1690 = vmatprep.subr.bf16.mxu0 %v1179
    %1691 = vmatpush1.bf16.msra.mxu0 %v1178
    %1692 = vmatprep.subr.bf16.mxu0 %v1175
    %1693 = vmatpush1.bf16.msra.mxu0 %v1174
    %1694 = vmatprep.subr.bf16.mxu0 %v1171
    %1695 = vmatpush1.bf16.msra.mxu0 %v1170
    %1696 = vmatprep.subr.bf16.mxu0 %v1167
    %1697 = vmatpush1.bf16.msra.mxu0 %v1166
    %1698 = vmatprep.subr.bf16.mxu0 %v1163
    %1699 = vmatpush1.bf16.msra.mxu0 %v1162
    %1700 = vmatprep.subr.bf16.mxu0 %v1159
    %1701 = vmatpush1.bf16.msra.mxu0 %v1158
    %1702 = vmatprep.subr.bf16.mxu0 %v1155
    %1703 = vmatpush1.bf16.msra.mxu0 %v1154
    %1704 = vmatprep.subr.bf16.mxu0 %v1215
    %1705 = vmatpush2.bf16.msra.mxu0 %v1214
    %1706 = vmatprep.subr.bf16.mxu0 %v1211
    %1707 = vmatpush2.bf16.msra.mxu0 %v1210
    %1708 = vmatprep.subr.bf16.mxu0 %v1207
    %1709 = vmatpush2.bf16.msra.mxu0 %v1206
    %1710 = vmatprep.subr.bf16.mxu0 %v1203
    %1711 = vmatpush2.bf16.msra.mxu0 %v1202
    %1712 = vmatprep.subr.bf16.mxu0 %v1199
    %1713 = vmatpush2.bf16.msra.mxu0 %v1198
    %1714 = vmatprep.subr.bf16.mxu0 %v1195
    %1715 = vmatpush2.bf16.msra.mxu0 %v1194
    %1716 = vmatprep.subr.bf16.mxu0 %v1191
    %1717 = vmatpush2.bf16.msra.mxu0 %v1190
    %1718 = vmatprep.subr.bf16.mxu0 %v1187
    %1719 = vmatpush2.bf16.msra.mxu0 %v1186
    %1720 = vmatprep.mubr.bf16.mxu0 %v493
    %1721 = vmatmul.mubr.bf16.gmra.mxu0 %v491
    %v1722 = vpop.f32.mrf.mxu0
    %v1723 = vadd.f32 %v1682, %v1722
    %v1724 = vpop.f32.mrf.mxu0
    %v1725 = vadd.f32 %v1684, %v1724
    %v1726 = vpop.f32.mrf.mxu0
    %v1727 = vpop.f32.mrf.mxu0
    %1728 = vdwg.mxu0
    %1729 = vmatprep.subr.bf16.mxu0 %v1247
    %1730 = vmatpush1.bf16.msra.mxu0 %v1246
    %1731 = vmatprep.subr.bf16.mxu0 %v1243
    %1732 = vmatpush1.bf16.msra.mxu0 %v1242
    %1733 = vmatprep.subr.bf16.mxu0 %v1239
    %1734 = vmatpush1.bf16.msra.mxu0 %v1238
    %1735 = vmatprep.subr.bf16.mxu0 %v1235
    %1736 = vmatpush1.bf16.msra.mxu0 %v1234
    %1737 = vmatprep.subr.bf16.mxu0 %v1231
    %1738 = vmatpush1.bf16.msra.mxu0 %v1230
    %1739 = vmatprep.subr.bf16.mxu0 %v1227
    %1740 = vmatpush1.bf16.msra.mxu0 %v1226
    %1741 = vmatprep.subr.bf16.mxu0 %v1223
    %1742 = vmatpush1.bf16.msra.mxu0 %v1222
    %1743 = vmatprep.subr.bf16.mxu0 %v1219
    %1744 = vmatpush1.bf16.msra.mxu0 %v1218
    %1745 = vmatprep.subr.bf16.mxu0 %v1279
    %1746 = vmatpush2.bf16.msra.mxu0 %v1278
    %1747 = vmatprep.subr.bf16.mxu0 %v1275
    %1748 = vmatpush2.bf16.msra.mxu0 %v1274
    %1749 = vmatprep.subr.bf16.mxu0 %v1271
    %1750 = vmatpush2.bf16.msra.mxu0 %v1270
    %1751 = vmatprep.subr.bf16.mxu0 %v1267
    %1752 = vmatpush2.bf16.msra.mxu0 %v1266
    %1753 = vmatprep.subr.bf16.mxu0 %v1263
    %1754 = vmatpush2.bf16.msra.mxu0 %v1262
    %1755 = vmatprep.subr.bf16.mxu0 %v1259
    %1756 = vmatpush2.bf16.msra.mxu0 %v1258
    %1757 = vmatprep.subr.bf16.mxu0 %v1255
    %1758 = vmatpush2.bf16.msra.mxu0 %v1254
    %1759 = vmatprep.subr.bf16.mxu0 %v1251
    %1760 = vmatpush2.bf16.msra.mxu0 %v1250
    %1761 = vmatprep.mubr.bf16.mxu0 %v490
    %1762 = vmatmul.mubr.bf16.gmra.mxu0 %v476
    %v1763 = vpop.f32.mrf.mxu0
    %v1764 = vadd.f32 %v1723, %v1763
    %v1765 = vpop.f32.mrf.mxu0
    %v1766 = vadd.f32 %v1725, %v1765
    %v1767 = vpop.f32.mrf.mxu0
    %v1768 = vpop.f32.mrf.mxu0
    %1769 = vdwg.mxu0
    %1770 = vmatprep.subr.bf16.mxu0 0
    %1771 = vmatpush1.bf16.msra.mxu0 0
    %1772 = vmatprep.subr.bf16.mxu0 0
    %1773 = vmatpush1.bf16.msra.mxu0 0
    %1774 = vmatprep.subr.bf16.mxu0 0
    %1775 = vmatpush1.bf16.msra.mxu0 0
    %1776 = vmatprep.subr.bf16.mxu0 0
    %1777 = vmatpush1.bf16.msra.mxu0 0
    %1778 = vmatprep.subr.bf16.mxu0 0
    %1779 = vmatpush1.bf16.msra.mxu0 0
    %1780 = vmatprep.subr.bf16.mxu0 0
    %1781 = vmatpush1.bf16.msra.mxu0 0
    %1782 = vmatprep.subr.bf16.mxu0 0
    %1783 = vmatpush1.bf16.msra.mxu0 0
    %1784 = vmatprep.subr.bf16.mxu0 %v1283
    %1785 = vmatpush1.bf16.msra.mxu0 %v1282
    %1786 = vmatprep.subr.bf16.mxu0 0
    %1787 = vmatpush2.bf16.msra.mxu0 0
    %1788 = vmatprep.subr.bf16.mxu0 0
    %1789 = vmatpush2.bf16.msra.mxu0 0
    %1790 = vmatprep.subr.bf16.mxu0 0
    %1791 = vmatpush2.bf16.msra.mxu0 0
    %1792 = vmatprep.subr.bf16.mxu0 0
    %1793 = vmatpush2.bf16.msra.mxu0 0
    %1794 = vmatprep.subr.bf16.mxu0 0
    %1795 = vmatpush2.bf16.msra.mxu0 0
    %1796 = vmatprep.subr.bf16.mxu0 0
    %1797 = vmatpush2.bf16.msra.mxu0 0
    %1798 = vmatprep.subr.bf16.mxu0 0
    %1799 = vmatpush2.bf16.msra.mxu0 0
    %1800 = vmatprep.subr.bf16.mxu0 0
    %1801 = vmatpush2.bf16.msra.mxu0 0
    %1802 = vmatprep.mubr.bf16.mxu0 0
    %1803 = vmatmul.mubr.bf16.gmra.mxu0 %v1481
    %v1804 = vpop.f32.mrf.mxu0
    %v1805 = vadd.f32 %v1764, %v1804
    %v1806 = vpop.f32.mrf.mxu0
    %v1807 = vadd.f32 %v1766, %v1806
    %v1808 = vpop.f32.mrf.mxu0
    %v1809 = vpop.f32.mrf.mxu0
    %1810 = vdwg.mxu0
    %v1811 = vmul.f32 %v1641, 0.2
    %v1812 = vmul.f32 %v1643, 0.2
    %v1813 = vmul.f32 %v1805, 0.2
    %v1814 = vmul.f32 %v1807, 0.2
    %v1815 = vmax.f32 %v1641, %v1811
    %v1816 = vmax.f32 %v1643, %v1812
    %v1817 = vmax.f32 %v1805, %v1813
    %v1818 = vmax.f32 %v1807, %v1814
    %v1819 = vpack.c.bf16 %v1815, %v1815
    %v1820 = vpack.c.bf16 %v1816, %v1816
    %v1821 = vpack.c.bf16 %v1817, %v1817
    %v1822 = vpack.c.bf16 %v1818, %v1818
    %v1823 = vld [vmem:[#allocation5] sm:$0xff]
    %v1824 = vld [vmem:[#allocation5 + $0x8] sm:$0xff]
    %v1825 = vld [vmem:[#allocation5 + $0x10] sm:$0xff]
    %v1826 = vld [vmem:[#allocation5 + $0x18] sm:$0xff]
    %v1827 = vld [vmem:[#allocation5 + $0x20] sm:$0xff]
    %v1828 = vld [vmem:[#allocation5 + $0x28] sm:$0xff]
    %v1829 = vld [vmem:[#allocation5 + $0x30] sm:$0xff]
    %v1830 = vld [vmem:[#allocation5 + $0x38] sm:$0xff]
    %v1831 = vld [vmem:[#allocation5 + $0x40] sm:$0xff]
    %v1832 = vld [vmem:[#allocation5 + $0x48] sm:$0xff]
    %v1833 = vld [vmem:[#allocation5 + $0x50] sm:$0xff]
    %v1834 = vld [vmem:[#allocation5 + $0x58] sm:$0xff]
    %v1835 = vld [vmem:[#allocation5 + $0x60] sm:$0xff]
    %v1836 = vld [vmem:[#allocation5 + $0x68] sm:$0xff]
    %v1837 = vld [vmem:[#allocation5 + $0x70] sm:$0xff]
    %v1838 = vld [vmem:[#allocation5 + $0x78] sm:$0xff]
    %v1839 = vld [vmem:[#allocation5 + $0x80] sm:$0xff]
    %v1840 = vld [vmem:[#allocation5 + $0x88] sm:$0xff]
    %v1841 = vld [vmem:[#allocation5 + $0x90] sm:$0xff]
    %v1842 = vld [vmem:[#allocation5 + $0x98] sm:$0xff]
    %v1843 = vld [vmem:[#allocation5 + $0xa0] sm:$0xff]
    %v1844 = vld [vmem:[#allocation5 + $0xa8] sm:$0xff]
    %v1845 = vld [vmem:[#allocation5 + $0xb0] sm:$0xff]
    %v1846 = vld [vmem:[#allocation5 + $0xb8] sm:$0xff]
    %v1847 = vld [vmem:[#allocation5 + $0xc0] sm:$0xff]
    %v1848 = vld [vmem:[#allocation5 + $0xc8] sm:$0xff]
    %v1849 = vld [vmem:[#allocation5 + $0xd0] sm:$0xff]
    %v1850 = vld [vmem:[#allocation5 + $0xd8] sm:$0xff]
    %v1851 = vld [vmem:[#allocation5 + $0xe0] sm:$0xff]
    %v1852 = vld [vmem:[#allocation5 + $0xe8] sm:$0xff]
    %v1853 = vld [vmem:[#allocation5 + $0xf0] sm:$0xff]
    %v1854 = vld [vmem:[#allocation5 + $0xf8] sm:$0xff]
    %v1855 = vld [vmem:[#allocation5 + $0x100] sm:$0xff]
    %v1856 = vld [vmem:[#allocation5 + $0x108] sm:$0xff]
    %v1857 = vld [vmem:[#allocation5 + $0x110] sm:$0xff]
    %v1858 = vld [vmem:[#allocation5 + $0x118] sm:$0xff]
    %v1859 = vld [vmem:[#allocation5 + $0x120] sm:$0xff]
    %v1860 = vld [vmem:[#allocation5 + $0x128] sm:$0xff]
    %v1861 = vld [vmem:[#allocation5 + $0x130] sm:$0xff]
    %v1862 = vld [vmem:[#allocation5 + $0x138] sm:$0xff]
    %v1863 = vld [vmem:[#allocation5 + $0x140] sm:$0xff]
    %v1864 = vld [vmem:[#allocation5 + $0x148] sm:$0xff]
    %v1865 = vld [vmem:[#allocation5 + $0x150] sm:$0xff]
    %v1866 = vld [vmem:[#allocation5 + $0x158] sm:$0xff]
    %v1867 = vld [vmem:[#allocation5 + $0x160] sm:$0xff]
    %v1868 = vld [vmem:[#allocation5 + $0x168] sm:$0xff]
    %v1869 = vld [vmem:[#allocation5 + $0x170] sm:$0xff]
    %v1870 = vld [vmem:[#allocation5 + $0x178] sm:$0xff]
    %v1871 = vld [vmem:[#allocation5 + $0x180] sm:$0xff]
    %v1872 = vld [vmem:[#allocation5 + $0x188] sm:$0xff]
    %v1873 = vld [vmem:[#allocation5 + $0x190] sm:$0xff]
    %v1874 = vld [vmem:[#allocation5 + $0x198] sm:$0xff]
    %v1875 = vld [vmem:[#allocation5 + $0x1a0] sm:$0xff]
    %v1876 = vld [vmem:[#allocation5 + $0x1a8] sm:$0xff]
    %v1877 = vld [vmem:[#allocation5 + $0x1b0] sm:$0xff]
    %v1878 = vld [vmem:[#allocation5 + $0x1b8] sm:$0xff]
    %v1879 = vld [vmem:[#allocation5 + $0x1c0] sm:$0xff]
    %v1880 = vld [vmem:[#allocation5 + $0x1c8] sm:$0xff]
    %v1881 = vld [vmem:[#allocation5 + $0x1d0] sm:$0xff]
    %v1882 = vld [vmem:[#allocation5 + $0x1d8] sm:$0xff]
    %v1883 = vld [vmem:[#allocation5 + $0x1e0] sm:$0xff]
    %v1884 = vld [vmem:[#allocation5 + $0x1e8] sm:$0xff]
    %v1885 = vld [vmem:[#allocation5 + $0x1f0] sm:$0xff]
    %v1886 = vld [vmem:[#allocation5 + $0x1f8] sm:$0xff]
    %v1887 = vld [vmem:[%s5] sm:$0x3]
    %v1889 = vlaneseq
    %v1890 = vshrl.u32 %v1889, 7
    %v1891 = vsub.s32 0, %v1890
    %v1892 = vrot.slane %v1887, %v1891
    %v1893 = vlaneseq
    %v1894 = vshrl.u32 %v1893, 7
    %v1895 = vsub.s32 1, %v1894
    %v1896 = vrot.slane %v1887, %v1895
    %v1963 = vunpack.c.l.b16 %v1823
    %v1964 = vunpack.c.h.b16 %v1823
    %v1965 = vunpack.c.l.b16 %v1824
    %v1966 = vunpack.c.h.b16 %v1824
    %v1967 = vunpack.c.l.b16 %v1825
    %v1968 = vunpack.c.h.b16 %v1825
    %v1969 = vunpack.c.l.b16 %v1826
    %v1970 = vunpack.c.h.b16 %v1826
    %v1971 = vunpack.c.l.b16 %v1827
    %v1972 = vunpack.c.h.b16 %v1827
    %v1973 = vunpack.c.l.b16 %v1828
    %v1974 = vunpack.c.h.b16 %v1828
    %v1975 = vunpack.c.l.b16 %v1829
    %v1976 = vunpack.c.h.b16 %v1829
    %v1977 = vunpack.c.l.b16 %v1830
    %v1978 = vunpack.c.h.b16 %v1830
    %v1979 = vunpack.c.l.b16 %v1831
    %v1980 = vunpack.c.h.b16 %v1831
    %v1981 = vunpack.c.l.b16 %v1832
    %v1982 = vunpack.c.h.b16 %v1832
    %v1983 = vunpack.c.l.b16 %v1833
    %v1984 = vunpack.c.h.b16 %v1833
    %v1985 = vunpack.c.l.b16 %v1834
    %v1986 = vunpack.c.h.b16 %v1834
    %v1987 = vunpack.c.l.b16 %v1835
    %v1988 = vunpack.c.h.b16 %v1835
    %v1989 = vunpack.c.l.b16 %v1836
    %v1990 = vunpack.c.h.b16 %v1836
    %v1991 = vunpack.c.l.b16 %v1837
    %v1992 = vunpack.c.h.b16 %v1837
    %v1993 = vunpack.c.l.b16 %v1838
    %v1994 = vunpack.c.h.b16 %v1838
    %v1995 = vunpack.c.l.b16 %v1839
    %v1996 = vunpack.c.h.b16 %v1839
    %v1997 = vunpack.c.l.b16 %v1840
    %v1998 = vunpack.c.h.b16 %v1840
    %v1999 = vunpack.c.l.b16 %v1841
    %v2000 = vunpack.c.h.b16 %v1841
    %v2001 = vunpack.c.l.b16 %v1842
    %v2002 = vunpack.c.h.b16 %v1842
    %v2003 = vunpack.c.l.b16 %v1843
    %v2004 = vunpack.c.h.b16 %v1843
    %v2005 = vunpack.c.l.b16 %v1844
    %v2006 = vunpack.c.h.b16 %v1844
    %v2007 = vunpack.c.l.b16 %v1845
    %v2008 = vunpack.c.h.b16 %v1845
    %v2009 = vunpack.c.l.b16 %v1846
    %v2010 = vunpack.c.h.b16 %v1846
    %v2011 = vunpack.c.l.b16 %v1847
    %v2012 = vunpack.c.h.b16 %v1847
    %v2013 = vunpack.c.l.b16 %v1848
    %v2014 = vunpack.c.h.b16 %v1848
    %v2015 = vunpack.c.l.b16 %v1849
    %v2016 = vunpack.c.h.b16 %v1849
    %v2017 = vunpack.c.l.b16 %v1850
    %v2018 = vunpack.c.h.b16 %v1850
    %v2019 = vunpack.c.l.b16 %v1851
    %v2020 = vunpack.c.h.b16 %v1851
    %v2021 = vunpack.c.l.b16 %v1852
    %v2022 = vunpack.c.h.b16 %v1852
    %v2023 = vunpack.c.l.b16 %v1853
    %v2024 = vunpack.c.h.b16 %v1853
    %v2025 = vunpack.c.l.b16 %v1854
    %v2026 = vunpack.c.h.b16 %v1854
    %v2027 = vunpack.c.l.b16 %v1855
    %v2028 = vunpack.c.h.b16 %v1855
    %v2029 = vunpack.c.l.b16 %v1856
    %v2030 = vunpack.c.h.b16 %v1856
    %v2031 = vunpack.c.l.b16 %v1857
    %v2032 = vunpack.c.h.b16 %v1857
    %v2033 = vunpack.c.l.b16 %v1858
    %v2034 = vunpack.c.h.b16 %v1858
    %v2035 = vunpack.c.l.b16 %v1859
    %v2036 = vunpack.c.h.b16 %v1859
    %v2037 = vunpack.c.l.b16 %v1860
    %v2038 = vunpack.c.h.b16 %v1860
    %v2039 = vunpack.c.l.b16 %v1861
    %v2040 = vunpack.c.h.b16 %v1861
    %v2041 = vunpack.c.l.b16 %v1862
    %v2042 = vunpack.c.h.b16 %v1862
    %v2043 = vunpack.c.l.b16 %v1863
    %v2044 = vunpack.c.h.b16 %v1863
    %v2045 = vunpack.c.l.b16 %v1864
    %v2046 = vunpack.c.h.b16 %v1864
    %v2047 = vunpack.c.l.b16 %v1865
    %v2048 = vunpack.c.h.b16 %v1865
    %v2049 = vunpack.c.l.b16 %v1866
    %v2050 = vunpack.c.h.b16 %v1866
    %v2051 = vunpack.c.l.b16 %v1867
    %v2052 = vunpack.c.h.b16 %v1867
    %v2053 = vunpack.c.l.b16 %v1868
    %v2054 = vunpack.c.h.b16 %v1868
    %v2055 = vunpack.c.l.b16 %v1869
    %v2056 = vunpack.c.h.b16 %v1869
    %v2057 = vunpack.c.l.b16 %v1870
    %v2058 = vunpack.c.h.b16 %v1870
    %v2059 = vunpack.c.l.b16 %v1871
    %v2060 = vunpack.c.h.b16 %v1871
    %v2061 = vunpack.c.l.b16 %v1872
    %v2062 = vunpack.c.h.b16 %v1872
    %v2063 = vunpack.c.l.b16 %v1873
    %v2064 = vunpack.c.h.b16 %v1873
    %v2065 = vunpack.c.l.b16 %v1874
    %v2066 = vunpack.c.h.b16 %v1874
    %v2067 = vunpack.c.l.b16 %v1875
    %v2068 = vunpack.c.h.b16 %v1875
    %v2069 = vunpack.c.l.b16 %v1876
    %v2070 = vunpack.c.h.b16 %v1876
    %v2071 = vunpack.c.l.b16 %v1877
    %v2072 = vunpack.c.h.b16 %v1877
    %v2073 = vunpack.c.l.b16 %v1878
    %v2074 = vunpack.c.h.b16 %v1878
    %v2075 = vunpack.c.l.b16 %v1879
    %v2076 = vunpack.c.h.b16 %v1879
    %v2077 = vunpack.c.l.b16 %v1880
    %v2078 = vunpack.c.h.b16 %v1880
    %v2079 = vunpack.c.l.b16 %v1881
    %v2080 = vunpack.c.h.b16 %v1881
    %v2081 = vunpack.c.l.b16 %v1882
    %v2082 = vunpack.c.h.b16 %v1882
    %v2083 = vunpack.c.l.b16 %v1883
    %v2084 = vunpack.c.h.b16 %v1883
    %v2085 = vunpack.c.l.b16 %v1884
    %v2086 = vunpack.c.h.b16 %v1884
    %v2087 = vunpack.c.l.b16 %v1885
    %v2088 = vunpack.c.h.b16 %v1885
    %v2089 = vunpack.c.l.b16 %v1886
    %v2090 = vunpack.c.h.b16 %v1886
    %v2091 = vpack.c.b16 %v1965, %v1963
    %v2092 = vpack.c.b16 %v1966, %v1964
    %v2093 = vpack.c.b16 %v1969, %v1967
    %v2094 = vpack.c.b16 %v1970, %v1968
    %v2095 = vpack.c.b16 %v1973, %v1971
    %v2096 = vpack.c.b16 %v1974, %v1972
    %v2097 = vpack.c.b16 %v1977, %v1975
    %v2098 = vpack.c.b16 %v1978, %v1976
    %v2099 = vpack.c.b16 %v1981, %v1979
    %v2100 = vpack.c.b16 %v1982, %v1980
    %v2101 = vpack.c.b16 %v1985, %v1983
    %v2102 = vpack.c.b16 %v1986, %v1984
    %v2103 = vpack.c.b16 %v1989, %v1987
    %v2104 = vpack.c.b16 %v1990, %v1988
    %v2105 = vpack.c.b16 %v1993, %v1991
    %v2106 = vpack.c.b16 %v1994, %v1992
    %v2107 = vpack.c.b16 %v1997, %v1995
    %v2108 = vpack.c.b16 %v1998, %v1996
    %v2109 = vpack.c.b16 %v2001, %v1999
    %v2110 = vpack.c.b16 %v2002, %v2000
    %v2111 = vpack.c.b16 %v2005, %v2003
    %v2112 = vpack.c.b16 %v2006, %v2004
    %v2113 = vpack.c.b16 %v2009, %v2007
    %v2114 = vpack.c.b16 %v2010, %v2008
    %v2115 = vpack.c.b16 %v2013, %v2011
    %v2116 = vpack.c.b16 %v2014, %v2012
    %v2117 = vpack.c.b16 %v2017, %v2015
    %v2118 = vpack.c.b16 %v2018, %v2016
    %v2119 = vpack.c.b16 %v2021, %v2019
    %v2120 = vpack.c.b16 %v2022, %v2020
    %v2121 = vpack.c.b16 %v2025, %v2023
    %v2122 = vpack.c.b16 %v2026, %v2024
    %v2123 = vpack.c.b16 %v2029, %v2027
    %v2124 = vpack.c.b16 %v2030, %v2028
    %v2125 = vpack.c.b16 %v2033, %v2031
    %v2126 = vpack.c.b16 %v2034, %v2032
    %v2127 = vpack.c.b16 %v2037, %v2035
    %v2128 = vpack.c.b16 %v2038, %v2036
    %v2129 = vpack.c.b16 %v2041, %v2039
    %v2130 = vpack.c.b16 %v2042, %v2040
    %v2131 = vpack.c.b16 %v2045, %v2043
    %v2132 = vpack.c.b16 %v2046, %v2044
    %v2133 = vpack.c.b16 %v2049, %v2047
    %v2134 = vpack.c.b16 %v2050, %v2048
    %v2135 = vpack.c.b16 %v2053, %v2051
    %v2136 = vpack.c.b16 %v2054, %v2052
    %v2137 = vpack.c.b16 %v2057, %v2055
    %v2138 = vpack.c.b16 %v2058, %v2056
    %v2139 = vpack.c.b16 %v2061, %v2059
    %v2140 = vpack.c.b16 %v2062, %v2060
    %v2141 = vpack.c.b16 %v2065, %v2063
    %v2142 = vpack.c.b16 %v2066, %v2064
    %v2143 = vpack.c.b16 %v2069, %v2067
    %v2144 = vpack.c.b16 %v2070, %v2068
    %v2145 = vpack.c.b16 %v2073, %v2071
    %v2146 = vpack.c.b16 %v2074, %v2072
    %v2147 = vpack.c.b16 %v2077, %v2075
    %v2148 = vpack.c.b16 %v2078, %v2076
    %v2149 = vpack.c.b16 %v2081, %v2079
    %v2150 = vpack.c.b16 %v2082, %v2080
    %v2151 = vpack.c.b16 %v2085, %v2083
    %v2152 = vpack.c.b16 %v2086, %v2084
    %v2153 = vpack.c.b16 %v2089, %v2087
    %v2154 = vpack.c.b16 %v2090, %v2088
    %2219 = vmatprep.subr.bf16.mxu0 %v2106
    %2220 = vmatpush1.bf16.msra.mxu0 %v2105
    %2221 = vmatprep.subr.bf16.mxu0 %v2104
    %2222 = vmatpush1.bf16.msra.mxu0 %v2103
    %2223 = vmatprep.subr.bf16.mxu0 %v2102
    %2224 = vmatpush1.bf16.msra.mxu0 %v2101
    %2225 = vmatprep.subr.bf16.mxu0 %v2100
    %2226 = vmatpush1.bf16.msra.mxu0 %v2099
    %2227 = vmatprep.subr.bf16.mxu0 %v2098
    %2228 = vmatpush1.bf16.msra.mxu0 %v2097
    %2229 = vmatprep.subr.bf16.mxu0 %v2096
    %2230 = vmatpush1.bf16.msra.mxu0 %v2095
    %2231 = vmatprep.subr.bf16.mxu0 %v2094
    %2232 = vmatpush1.bf16.msra.mxu0 %v2093
    %2233 = vmatprep.subr.bf16.mxu0 %v2092
    %2234 = vmatpush1.bf16.msra.mxu0 %v2091
    %2235 = vmatprep.subr.bf16.mxu0 %v2122
    %2236 = vmatpush2.bf16.msra.mxu0 %v2121
    %2237 = vmatprep.subr.bf16.mxu0 %v2120
    %2238 = vmatpush2.bf16.msra.mxu0 %v2119
    %2239 = vmatprep.subr.bf16.mxu0 %v2118
    %2240 = vmatpush2.bf16.msra.mxu0 %v2117
    %2241 = vmatprep.subr.bf16.mxu0 %v2116
    %2242 = vmatpush2.bf16.msra.mxu0 %v2115
    %2243 = vmatprep.subr.bf16.mxu0 %v2114
    %2244 = vmatpush2.bf16.msra.mxu0 %v2113
    %2245 = vmatprep.subr.bf16.mxu0 %v2112
    %2246 = vmatpush2.bf16.msra.mxu0 %v2111
    %2247 = vmatprep.subr.bf16.mxu0 %v2110
    %2248 = vmatpush2.bf16.msra.mxu0 %v2109
    %2249 = vmatprep.subr.bf16.mxu0 %v2108
    %2250 = vmatpush2.bf16.msra.mxu0 %v2107
    %2251 = vmatprep.mubr.bf16.mxu0 %v1820
    %2252 = vmatmul.mubr.bf16.gmra.mxu0 %v1819
    %v2253 = vpop.f32.mrf.mxu0
    %v2254 = vadd.f32 %v1892, %v2253
    %v2255 = vpop.f32.mrf.mxu0
    %v2256 = vadd.f32 %v1896, %v2255
    %v2257 = vpop.f32.mrf.mxu0
    %v2258 = vpop.f32.mrf.mxu0
    %2259 = vdwg.mxu0
    %2260 = vmatprep.subr.bf16.mxu0 %v2138
    %2261 = vmatpush1.bf16.msra.mxu0 %v2137
    %2262 = vmatprep.subr.bf16.mxu0 %v2136
    %2263 = vmatpush1.bf16.msra.mxu0 %v2135
    %2264 = vmatprep.subr.bf16.mxu0 %v2134
    %2265 = vmatpush1.bf16.msra.mxu0 %v2133
    %2266 = vmatprep.subr.bf16.mxu0 %v2132
    %2267 = vmatpush1.bf16.msra.mxu0 %v2131
    %2268 = vmatprep.subr.bf16.mxu0 %v2130
    %2269 = vmatpush1.bf16.msra.mxu0 %v2129
    %2270 = vmatprep.subr.bf16.mxu0 %v2128
    %2271 = vmatpush1.bf16.msra.mxu0 %v2127
    %2272 = vmatprep.subr.bf16.mxu0 %v2126
    %2273 = vmatpush1.bf16.msra.mxu0 %v2125
    %2274 = vmatprep.subr.bf16.mxu0 %v2124
    %2275 = vmatpush1.bf16.msra.mxu0 %v2123
    %2276 = vmatprep.subr.bf16.mxu0 %v2154
    %2277 = vmatpush2.bf16.msra.mxu0 %v2153
    %2278 = vmatprep.subr.bf16.mxu0 %v2152
    %2279 = vmatpush2.bf16.msra.mxu0 %v2151
    %2280 = vmatprep.subr.bf16.mxu0 %v2150
    %2281 = vmatpush2.bf16.msra.mxu0 %v2149
    %2282 = vmatprep.subr.bf16.mxu0 %v2148
    %2283 = vmatpush2.bf16.msra.mxu0 %v2147
    %2284 = vmatprep.subr.bf16.mxu0 %v2146
    %2285 = vmatpush2.bf16.msra.mxu0 %v2145
    %2286 = vmatprep.subr.bf16.mxu0 %v2144
    %2287 = vmatpush2.bf16.msra.mxu0 %v2143
    %2288 = vmatprep.subr.bf16.mxu0 %v2142
    %2289 = vmatpush2.bf16.msra.mxu0 %v2141
    %2290 = vmatprep.subr.bf16.mxu0 %v2140
    %2291 = vmatpush2.bf16.msra.mxu0 %v2139
    %2292 = vmatprep.mubr.bf16.mxu0 %v1822
    %2293 = vmatmul.mubr.bf16.gmra.mxu0 %v1821
    %v2294 = vpop.f32.mrf.mxu0
    %v2295 = vadd.f32 %v2254, %v2294
    %v2296 = vpop.f32.mrf.mxu0
    %v2297 = vadd.f32 %v2256, %v2296
    %v2298 = vpop.f32.mrf.mxu0
    %v2299 = vpop.f32.mrf.mxu0
    %2300 = vdwg.mxu0
    %v2301 = vmul.f32 %v2295, 0.2
    %v2302 = vmul.f32 %v2297, 0.2
    %v2303 = vmax.f32 %v2295, %v2301
    %v2304 = vmax.f32 %v2297, %v2302
    %v2305 = vld [vmem:[%s6] sm:$0x3]
    %v2307 = vlaneseq
    %v2308 = vshrl.u32 %v2307, 7
    %v2309 = vsub.s32 0, %v2308
    %v2310 = vrot.slane %v2305, %v2309
    %v2311 = vlaneseq
    %v2312 = vshrl.u32 %v2311, 7
    %v2313 = vsub.s32 1, %v2312
    %v2314 = vrot.slane %v2305, %v2313
    %v2317 = vmul.f32 %v2303, %v2310
    %v2318 = vmul.f32 %v2304, %v2314
    %v2319 = vadd.f32 %v2317, %v2318
    %2320 = vadd.xlane.f32.xlu0 %v2319
    %v2321 = vpop.xlane.xlu0 %2320
    %v2322 = vld [vmem:[#allocation2] sm:$0x1]
    %v2324 = vlaneseq
    %v2325 = vshrl.u32 %v2324, 7
    %v2326 = vsub.s32 0, %v2325
    %v2327 = vrot.slane %v2322, %v2326
    %v2329 = vadd.f32 %v2321, %v2327
    %v2330 = vxor.u32 %v2329, 2147483648
    %v2331 = vmul.f32 %v2330, 1.442695
    %v2332 = vpow.pop %v2331
    %v2333 = vadd.f32 %v2332, 1.0
    %v2334 = vrcp.pop %v2333
    %v2335 = vmul.f32 1.0, %v2334
    %vm2336 = vcmask 7168
    %2337 = vst.msk [vmem:[#allocation7] sm:$0xff] %vm2336, %v2335
    // Predicated region
    $region42: #{discriminator_forward.1} parent=1 // pred_check
      _
    $region43: #{discriminator_forward.1} parent=1 // pred_check_branch
      %2339 = sbr.rel (0) target = $region45
    $region44: #{discriminator_forward.1} parent=1 // pred_region
      // Predicated region
      $region46: #{discriminator_forward.1} parent=44 // pred_check
        _
      $region47: #{discriminator_forward.1} parent=44 // pred_check_branch
        %2341 = sbr.rel (0) target = $region49
      $region48: #{discriminator_forward.1} parent=44 // pred_region
        // Predicated region
        $region50: #{discriminator_forward.1} parent=48 // pred_check
          _
        $region51: #{discriminator_forward.1} parent=48 // pred_check_branch
          %2343 = sbr.rel target = $region53
        $region52: #{discriminator_forward.1} parent=48 // pred_region
          // Predicated region
          $region65: #{discriminator_forward.1} parent=52 // pred_check
            _
          $region66: #{discriminator_forward.1} parent=52 // pred_check_branch
            %2359 = sbr.rel (0) target = $region68
          $region67: #{discriminator_forward.1} parent=52 // pred_region
            %s2361 = ssub.s32 4, 1
            loop: start=0, step=1, limit=1
            $region69: #{discriminator_forward.1} parent=67 // loop_pre_header
              _
            $region70: #{discriminator_forward.1} parent=67 // loop_header
              %s2363 = sphi 0, %s2367
              %p2364 = scmp.ge.s32.totalorder %s2363, 1
              %s2368 = sphi [#allocation7], [#allocation7]
              %s2369 = sphi %s8, %s8
            $region71: #{discriminator_forward.1} parent=67 // loop_header_branch
              %2366 = sbr.rel (%p2364) target = $region75
            $region72: #{discriminator_forward.1} parent=67 // loop_body
              %v2370 = vld [vmem:[%s2368] sm:%s2361]
              %2371 = vst [vmem:[%s2369] sm:%s2361] %v2370
            $region73: #{discriminator_forward.1} parent=67 // loop_footer
              %s2367 = sadd.s32 1, %s2363
            $region74: #{discriminator_forward.1} parent=67 // loop_footer_branch
              %2362 = sbr.rel target = $region70
            $region75: #{discriminator_forward.1} parent=67 // loop_exit
              _
          $region68: #{discriminator_forward.1} parent=52 // pred_fallthru
            _
        $region53: #{discriminator_forward.1} parent=48 // pred_fallthru
          _
        // Predicated region
        $region54: #{discriminator_forward.1} parent=48 // pred_check
          _
        $region55: #{discriminator_forward.1} parent=48 // pred_check_branch
          %2345 = sbr.rel (0) target = $region57
        $region56: #{discriminator_forward.1} parent=48 // pred_region
          %s2347 = ssub.s32 4, 1
          loop: start=0, step=1, limit=1
          $region58: #{discriminator_forward.1} parent=56 // loop_pre_header
            _
          $region59: #{discriminator_forward.1} parent=56 // loop_header
            %s2349 = sphi 0, %s2353
            %p2350 = scmp.ge.s32.totalorder %s2349, 1
            %s2354 = sphi [#allocation7], [#allocation7]
            %s2355 = sphi %s8, %s8
          $region60: #{discriminator_forward.1} parent=56 // loop_header_branch
            %2352 = sbr.rel (%p2350) target = $region64
          $region61: #{discriminator_forward.1} parent=56 // loop_body
            %v2356 = vld [vmem:[%s2354] sm:%s2347]
            %2357 = vst [vmem:[%s2355] sm:%s2347] %v2356
          $region62: #{discriminator_forward.1} parent=56 // loop_footer
            %s2353 = sadd.s32 1, %s2349
          $region63: #{discriminator_forward.1} parent=56 // loop_footer_branch
            %2348 = sbr.rel target = $region59
          $region64: #{discriminator_forward.1} parent=56 // loop_exit
            _
        $region57: #{discriminator_forward.1} parent=48 // pred_fallthru
          _
      $region49: #{discriminator_forward.1} parent=44 // pred_fallthru
        _
      %2372 = vnop
    $region45: #{discriminator_forward.1} parent=1 // pred_fallthru
      _
    // Predicated region
    $region76: #{discriminator_forward.1} parent=1 // pred_check
      _
    $region77: #{discriminator_forward.1} parent=1 // pred_check_branch
      %2374 = sbr.rel (0) target = $region79
    $region78: #{discriminator_forward.1} parent=1 // pred_region
      _
    $region79: #{discriminator_forward.1} parent=1 // pred_fallthru
      _
    %2375 = vsyncpa [#allocation4], 1
    %2376 = vsyncpa [#allocation6], 1

</llo_original>
